<compile_context>
chip_gen: v6e
topology: v6e:2x2x1
jax: 0.10.0
libtpu: 0.0.40
codegen_flags: <defaults>
</compile_context>

<pallas_src>
import functools

import numpy as np
import jax
import jax.numpy as jnp
from jax.experimental import pallas as pl
from jax.experimental.pallas import tpu as pltpu


def _round_up(x, m):
    return ((x + m - 1) // m) * m


# ----------------------------------------------------------------------------
# Fused kernel: upsample + pad + concat + (conv3x3 + folded-BN + ReLU) x 2,
# whole batch in one grid step (padded-lane layout).
# ----------------------------------------------------------------------------
def _fused_up_doubleconv_kernel(x1_ref, x2_ref, up_ref, mask_ref,
                                w1_ref, b1_ref, w2_ref, b2_ref,
                                o_ref,
                                xbuf_ref, mbuf_ref,
                                *, N, C1, C2, H, W, lead, S):
    # x1_ref:  (N*C1, h*w)     deep feature maps, spatial flattened
    # x2_ref:  (N*C2, H*W)     skip connections, spatial flattened
    # up_ref:  (h*w, H*W)      constant bilinear-x2(+center pad) matrix
    # mask_ref:(3, Wc)         rows: [dx=-1 mask, dx=+1 mask, valid-column mask]
    # w1_ref:  (mid, 9*Cin)    conv1 weights * BN1 scale, im2col (tap-major)
    # b1_ref:  (mid, 1)        folded BN1 bias
    # w2_ref:  (Cout, 9*mid)   conv2 weights * BN2 scale, im2col (tap-major)
    # b2_ref:  (Cout, 1)       folded BN2 bias
    # o_ref:   (N*Cout, H*W)   lane-dense output
    # xbuf_ref:(Cin, Lb)       padded-lane conv1 input slab (VMEM scratch)
    # mbuf_ref:(mid, Lb)       padded-lane conv2 input slab (VMEM scratch)
    Cin = C1 + C2
    mid = w1_ref.shape[0]
    Cout = w2_ref.shape[0]
    HW = H * W
    Wc = (N - 1) * S + HW            # conv span: covers every image pixel
    Lb = xbuf_ref.shape[1]

    mask_l = mask_ref[0:1, :]        # 0 where in-image col x == 0    (kills dx=-1 wrap)
    mask_r = mask_ref[1:2, :]        # 0 where in-image col x == W-1  (kills dx=+1 wrap)
    valid = mask_ref[2:3, :]         # 0 on inter-image gap columns

    # --- zero ONLY the margin / inter-image gap lanes (they are never
    #     overwritten); image interiors are written exactly once below.
    xbuf_ref[:, 0:lead] = jnp.zeros((Cin, lead), jnp.float32)
    for b in range(N):
        gs = lead + b * S + HW
        ge = Lb if b == N - 1 else lead + (b + 1) * S
        xbuf_ref[:, gs:ge] = jnp.zeros((Cin, ge - gs), jnp.float32)
    mbuf_ref[:, 0:lead] = jnp.zeros((mid, lead), jnp.float32)
    if Lb > lead + Wc:
        mbuf_ref[:, lead + Wc:Lb] = jnp.zeros((mid, Lb - lead - Wc), jnp.float32)

    # --- bilinear x2 upsample (align_corners=True) for all N*C1 maps: ONE matmul
    up_all = jnp.dot(x1_ref[...].astype(jnp.float32), up_ref[...],
                     preferred_element_type=jnp.float32)          # (N*C1, H*W)

    # --- channel-concat [x2, up] per image into the padded-lane slab.
    #     Image slots start on 128-aligned lanes => unmasked lane-dense stores.
    for b in range(N):
        off = lead + b * S
        xbuf_ref[0:C2, off:off + HW] = (
            x2_ref[b * C2:(b + 1) * C2, :].astype(jnp.float32))
        xbuf_ref[C2:Cin, off:off + HW] = up_all[b * C1:(b + 1) * C1, :]

    def conv3x3_bias_relu(buf_ref, w_ref, bias, n_in, mask_gaps):
        # 3x3 SAME conv as flat shifted slices, grouped by dy: 3 matmuls of
        # (Cs, 3*n_in) @ (3*n_in, Wc) accumulated in f32 (lower vreg pressure
        # than one 9-tap concat).  BN scale already folded into w_ref.
        acc = None
        for dy in range(3):
            taps = []
            for dx in range(3):
                start = lead + (dy - 1) * W + (dx - 1)
                s = buf_ref[:, start:start + Wc]                  # (n_in, Wc)
                if dx == 0:
                    s = s * mask_l
                elif dx == 2:
                    s = s * mask_r
                taps.append(s)
            group = jnp.concatenate(taps, axis=0)                 # (3*n_in, Wc)
            wg = w_ref[:, dy * 3 * n_in:(dy + 1) * 3 * n_in]      # (Cs, 3*n_in)
            part = jnp.dot(wg, group, preferred_element_type=jnp.float32)
            acc = part if acc is None else acc + part
        y = jnp.maximum(acc + bias, 0.0)                          # (Cs, Wc)
        if mask_gaps:
            y = y * valid      # keep inter-image gap columns exactly zero
        return y

    y1 = conv3x3_bias_relu(xbuf_ref, w1_ref, b1_ref[...], Cin, mask_gaps=True)

    # conv1 -> conv2 intermediate stays in VMEM; one aligned 128-multiple store.
    mbuf_ref[:, lead:lead + Wc] = y1

    y2 = conv3x3_bias_relu(mbuf_ref, w2_ref, b2_ref[...], mid, mask_gaps=False)

    # Final store: only the per-image interiors (lane-dense, aligned).
    for b in range(N):
        o_ref[b * Cout:(b + 1) * Cout, :] = (
            y2[:, b * S:b * S + HW].astype(o_ref.dtype))


# ----------------------------------------------------------------------------
# Host-side constant builders (shapes are static, so these are pure numpy)
# ----------------------------------------------------------------------------
def _linear_interp_matrix(n_in, n_out):
    """A (n_out, n_in) with A @ v = 1-D bilinear(align_corners=True) resample."""
    A = np.zeros((n_out, n_in), np.float32)
    if n_in == 1:
        A[:, 0] = 1.0
        return A
    coords = np.arange(n_out, dtype=np.float64) * (n_in - 1) / (n_out - 1)
    i0 = np.minimum(np.floor(coords).astype(np.int64), n_in - 1)
    i1 = np.minimum(i0 + 1, n_in - 1)
    f = (coords - i0).astype(np.float32)
    A[np.arange(n_out), i0] += 1.0 - f
    A[np.arange(n_out), i1] += f
    return A


def _make_upsample_matrix(h, w, H, W):
    """(h*w, H*W) matrix: flat x1 -> flat (bilinear x2 upsample + center pad)."""
    H1, W1 = 2 * h, 2 * w
    dy, dx = H - H1, W - W1
    assert dy >= 0 and dx >= 0, "x2 must be at least as large as upsampled x1"
    oy, ox = dy // 2, dx // 2
    K = np.kron(_linear_interp_matrix(h, H1),
                _linear_interp_matrix(w, W1))          # (H1*W1, h*w)
    M = np.zeros((H * W, h * w), np.float32)
    for Y in range(H1):
        r = (Y + oy) * W + ox
        M[r:r + W1, :] = K[Y * W1:(Y + 1) * W1, :]
    return M.T                                         # (h*w, H*W)


def _make_masks(N, H, W, S):
    """(3, Wc) column masks over the padded-lane conv span."""
    HW = H * W
    Wc = (N - 1) * S + HW
    j = np.arange(Wc)
    p = j % S                       # position within image slot
    in_img = p < HW
    x = p % W
    mask_l = np.where(in_img & (x == 0), 0.0, 1.0)
    mask_r = np.where(in_img & (x == W - 1), 0.0, 1.0)
    valid = in_img.astype(np.float64)
    return np.stack([mask_l, mask_r, valid]).astype(np.float32)


# ----------------------------------------------------------------------------
# Public wrapper: NCHW in, NCHW out (only free reshapes at the boundary)
# ----------------------------------------------------------------------------
def up_forward(x1_nchw, x2_nchw, params):
    N, C1, h, w = x1_nchw.shape
    N2, C2, H, W = x2_nchw.shape
    assert N2 == N
    Cin = C1 + C2
    mid = params["w1"].shape[-1]
    Cout = params["w2"].shape[-1]
    HW = H * W
    hw = h * w

    # Padded-lane layout: 128-aligned image slots side by side on the lane axis.
    lead = 128                                   # left margin (>= W+1, aligned)
    gap = _round_up(W + 1, 128)                  # inter-image / trailing gap
    S = HW + gap                                 # per-image slot stride
    Wc = (N - 1) * S + HW                        # conv span
    Lb = _round_up(lead + Wc + W + 1, 128)       # slab length (covers max tap read)
    assert lead >= W + 1 and gap >= W + 1

    # Contiguous reshapes only: free metadata ops, no transpose, no HBM pass.
    x1_flat = x1_nchw.reshape(N * C1, hw).astype(jnp.float32)
    x2_flat = x2_nchw.reshape(N * C2, HW).astype(jnp.float32)

    up_mat = jnp.asarray(_make_upsample_matrix(h, w, H, W))       # (hw, HW)
    masks = jnp.asarray(_make_masks(N, H, W, S))                  # (3, Wc)

    # Conv weights HWIO -> im2col layout (Cout_stage, 9*Cin_stage), tap-major,
    # with the eval-mode BatchNorm scale folded in host-side.
    s1 = params["scale1"].astype(jnp.float32)
    s2 = params["scale2"].astype(jnp.float32)
    w1m = (jnp.transpose(params["w1"], (3, 0, 1, 2)).reshape(mid, 9 * Cin)
           * s1[:, None]).astype(jnp.float32)
    w2m = (jnp.transpose(params["w2"], (3, 0, 1, 2)).reshape(Cout, 9 * mid)
           * s2[:, None]).astype(jnp.float32)
    b1 = params["bias1"].reshape(mid, 1).astype(jnp.float32)
    b2 = params["bias2"].reshape(Cout, 1).astype(jnp.float32)

    kernel = functools.partial(
        _fused_up_doubleconv_kernel,
        N=N, C1=C1, C2=C2, H=H, W=W, lead=lead, S=S)
    c = lambda n: (0, 0)   # single grid step; everything resident in VMEM

    out_flat = pl.pallas_call(
        kernel,
        out_shape=jax.ShapeDtypeStruct((N * Cout, HW), x2_nchw.dtype),
        grid_spec=pltpu.PrefetchScalarGridSpec(
            num_scalar_prefetch=0,
            grid=(1,),
            in_specs=[
                pl.BlockSpec((N * C1, hw), c),
                pl.BlockSpec((N * C2, HW), c),
                pl.BlockSpec((hw, HW), c),
                pl.BlockSpec((3, Wc), c),
                pl.BlockSpec((mid, 9 * Cin), c),
                pl.BlockSpec((mid, 1), c),
                pl.BlockSpec((Cout, 9 * mid), c),
                pl.BlockSpec((Cout, 1), c),
            ],
            out_specs=pl.BlockSpec((N * Cout, HW), c),
            scratch_shapes=[
                pltpu.VMEM((Cin, Lb), jnp.float32),
                pltpu.VMEM((mid, Lb), jnp.float32),
            ],
        ),
        compiler_params=pltpu.CompilerParams(
            dimension_semantics=("arbitrary",)),
    )(x1_flat, x2_flat, up_mat, masks, w1m, b1, w2m, b2)

    return out_flat.reshape(N, Cout, H, W)


# ----------------------------------------------------------------------------
# Pure-JAX reference (independent path: gather-based upsample + lax.conv)
# ----------------------------------------------------------------------------
def upsample_bilinear_x2_align_corners_nhwc(x):
    N, H, W, C = x.shape
    Ho, Wo = 2 * H, 2 * W

    def coords(n_in, n_out):
        if n_in == 1:
            return jnp.zeros((n_out,), jnp.float32)
        return jnp.arange(n_out, dtype=jnp.float32) * ((n_in - 1) / (n_out - 1))

    ys = coords(H, Ho)
    xs = coords(W, Wo)
    y0 = jnp.floor(ys).astype(jnp.int32)
    y1 = jnp.minimum(y0 + 1, H - 1)
    wy = (ys - y0.astype(jnp.float32))[None, :, None, None]
    x0 = jnp.floor(xs).astype(jnp.int32)
    x1 = jnp.minimum(x0 + 1, W - 1)
    wx = (xs - x0.astype(jnp.float32))[None, None, :, None]

    top = x[:, y0, :, :]
    bot = x[:, y1, :, :]
    rows = top * (1.0 - wy) + bot * wy
    left = rows[:, :, x0, :]
    right = rows[:, :, x1, :]
    return left * (1.0 - wx) + right * wx


def ref_forward(x1_nchw, x2_nchw, params):
    x1 = jnp.transpose(x1_nchw, (0, 2, 3, 1))
    x2 = jnp.transpose(x2_nchw, (0, 2, 3, 1))
    x1 = upsample_bilinear_x2_align_corners_nhwc(x1)
    diff_y = x2.shape[1] - x1.shape[1]
    diff_x = x2.shape[2] - x1.shape[2]
    x1 = jnp.pad(x1, ((0, 0),
                      (diff_y // 2, diff_y - diff_y // 2),
                      (diff_x // 2, diff_x - diff_x // 2),
                      (0, 0)))
    x = jnp.concatenate([x2, x1], axis=-1)

    def conv_bn_relu(x, w, s, b):
        y = jax.lax.conv_general_dilated(
            x, w, window_strides=(1, 1), padding="SAME",
            dimension_numbers=("NHWC", "HWIO", "NHWC"))
        return jnp.maximum(y * s[None, None, None, :] + b[None, None, None, :], 0.0)

    y = conv_bn_relu(x, params["w1"], params["scale1"], params["bias1"])
    y = conv_bn_relu(y, params["w2"], params["scale2"], params["bias2"])
    return jnp.transpose(y, (0, 3, 1, 2))


# ----------------------------------------------------------------------------
# Deterministic parameter construction (Up(in_channels=8, out_channels=8))
# ----------------------------------------------------------------------------
def make_params(in_channels, out_channels, key):
    mid_channels = in_channels // 2
    eps = 1e-5
    ks = jax.random.split(key, 10)

    w1 = 0.1 * jax.random.normal(ks[0], (3, 3, in_channels, mid_channels), jnp.float32)
    w2 = 0.1 * jax.random.normal(ks[1], (3, 3, mid_channels, out_channels), jnp.float32)

    g1 = jax.random.uniform(ks[2], (mid_channels,), jnp.float32, 0.5, 1.5)
    b1 = 0.1 * jax.random.normal(ks[3], (mid_channels,), jnp.float32)
    m1 = 0.1 * jax.random.normal(ks[4], (mid_channels,), jnp.float32)
    v1 = jax.random.uniform(ks[5], (mid_channels,), jnp.float32, 0.5, 1.5)

    g2 = jax.random.uniform(ks[6], (out_channels,), jnp.float32, 0.5, 1.5)
    b2 = 0.1 * jax.random.normal(ks[7], (out_channels,), jnp.float32)
    m2 = 0.1 * jax.random.normal(ks[8], (out_channels,), jnp.float32)
    v2 = jax.random.uniform(ks[9], (out_channels,), jnp.float32, 0.5, 1.5)

    scale1 = g1 / jnp.sqrt(v1 + eps)
    bias1 = b1 - m1 * scale1
    scale2 = g2 / jnp.sqrt(v2 + eps)
    bias2 = b2 - m2 * scale2

    return {"w1": w1, "scale1": scale1, "bias1": bias1,
            "w2": w2, "scale2": scale2, "bias2": bias2}


if __name__ == "__main__":
    in_channels, out_channels = 8, 8
    N, H2, W2 = 2, 16, 16

    key = jax.random.PRNGKey(0)
    k1, k2, kp = jax.random.split(key, 3)

    # x1: deeper feature map (half spatial, half channels); x2: skip connection
    x1 = jax.random.normal(k1, (N, in_channels // 2, H2 // 2, W2 // 2), jnp.float32)
    x2 = jax.random.normal(k2, (N, in_channels // 2, H2, W2), jnp.float32)
    params = make_params(in_channels, out_channels, kp)

    out = jax.block_until_ready(up_forward(x1, x2, params))
    ref = jax.block_until_ready(ref_forward(x1, x2, params))

    assert out.shape == (N, out_channels, H2, W2), out.shape
    max_err = float(jnp.max(jnp.abs(out - ref)))
    assert jnp.allclose(out, ref, rtol=1e-3, atol=1e-3), max_err

    print("KERNEL_OK")
</pallas_src>

<mosaic_0001>
module attributes {stable_mosaic.version = 11 : i64} {
  func.func @_fused_up_doubleconv_kernel(%arg0: i32, %arg1: memref<8x64xf32, #tpu.memory_space<vmem>>, %arg2: memref<8x256xf32, #tpu.memory_space<vmem>>, %arg3: memref<64x256xf32, #tpu.memory_space<vmem>>, %arg4: memref<3x640xf32, #tpu.memory_space<vmem>>, %arg5: memref<4x72xf32, #tpu.memory_space<vmem>>, %arg6: memref<4x1xf32, #tpu.memory_space<vmem>>, %arg7: memref<8x36xf32, #tpu.memory_space<vmem>>, %arg8: memref<8x1xf32, #tpu.memory_space<vmem>>, %arg9: memref<16x256xf32, #tpu.memory_space<vmem>>, %arg10: memref<8x896xf32, #tpu.memory_space<vmem>>, %arg11: memref<4x896xf32, #tpu.memory_space<vmem>>) attributes {dimension_semantics = [#tpu.dimension_semantics<arbitrary>], iteration_bounds = array<i64: 1>, scalar_prefetch = 0 : i64, scratch_operands = 2 : i64, tpu.core_type = #tpu.core_type<tc>, window_params = [{pipeline_mode = #tpu.pipeline_mode<synchronous>, transform_indices = @transform_0, window_bounds = array<i64: 8, 64>}, {pipeline_mode = #tpu.pipeline_mode<synchronous>, transform_indices = @transform_1, window_bounds = array<i64: 8, 256>}, {pipeline_mode = #tpu.pipeline_mode<synchronous>, transform_indices = @transform_2, window_bounds = array<i64: 64, 256>}, {pipeline_mode = #tpu.pipeline_mode<synchronous>, transform_indices = @transform_3, window_bounds = array<i64: 3, 640>}, {pipeline_mode = #tpu.pipeline_mode<synchronous>, transform_indices = @transform_4, window_bounds = array<i64: 4, 72>}, {pipeline_mode = #tpu.pipeline_mode<synchronous>, transform_indices = @transform_5, window_bounds = array<i64: 4, 1>}, {pipeline_mode = #tpu.pipeline_mode<synchronous>, transform_indices = @transform_6, window_bounds = array<i64: 8, 36>}, {pipeline_mode = #tpu.pipeline_mode<synchronous>, transform_indices = @transform_7, window_bounds = array<i64: 8, 1>}, {pipeline_mode = #tpu.pipeline_mode<synchronous>, transform_indices = @transform_8, window_bounds = array<i64: 16, 256>}]} {
    %c0 = arith.constant 0 : index
    %c0_0 = arith.constant 0 : index
    %0 = vector.load %arg4[%c0, %c0_0] : memref<3x640xf32, #tpu.memory_space<vmem>>, vector<1x640xf32>
    %c1 = arith.constant 1 : index
    %c0_1 = arith.constant 0 : index
    %1 = vector.load %arg4[%c1, %c0_1] : memref<3x640xf32, #tpu.memory_space<vmem>>, vector<1x640xf32>
    %c2 = arith.constant 2 : index
    %c0_2 = arith.constant 0 : index
    %2 = vector.load %arg4[%c2, %c0_2] : memref<3x640xf32, #tpu.memory_space<vmem>>, vector<1x640xf32>
    %cst = arith.constant 0.000000e+00 : f32
    %3 = vector.broadcast %cst : f32 to vector<8x128xf32>
    %c0_3 = arith.constant 0 : index
    %c0_4 = arith.constant 0 : index
    %4 = vector.load %arg10[%c0_3, %c0_4] : memref<8x896xf32, #tpu.memory_space<vmem>>, vector<8x128xf32>
    tpu.vector_store %arg10[%c0_3, %c0_4], %3 {strides = array<i32>} : memref<8x896xf32, #tpu.memory_space<vmem>>, vector<8x128xf32>,
    %cst_5 = arith.constant 0.000000e+00 : f32
    %5 = vector.broadcast %cst_5 : f32 to vector<8x128xf32>
    %c0_6 = arith.constant 0 : index
    %c384 = arith.constant 384 : index
    %6 = vector.load %arg10[%c0_6, %c384] : memref<8x896xf32, #tpu.memory_space<vmem>>, vector<8x128xf32>
    tpu.vector_store %arg10[%c0_6, %c384], %5 {strides = array<i32>} : memref<8x896xf32, #tpu.memory_space<vmem>>, vector<8x128xf32>,
    %cst_7 = arith.constant 0.000000e+00 : f32
    %7 = vector.broadcast %cst_7 : f32 to vector<8x128xf32>
    %c0_8 = arith.constant 0 : index
    %c768 = arith.constant 768 : index
    %8 = vector.load %arg10[%c0_8, %c768] : memref<8x896xf32, #tpu.memory_space<vmem>>, vector<8x128xf32>
    tpu.vector_store %arg10[%c0_8, %c768], %7 {strides = array<i32>} : memref<8x896xf32, #tpu.memory_space<vmem>>, vector<8x128xf32>,
    %cst_9 = arith.constant 0.000000e+00 : f32
    %9 = vector.broadcast %cst_9 : f32 to vector<4x128xf32>
    %c0_10 = arith.constant 0 : index
    %c0_11 = arith.constant 0 : index
    %10 = vector.load %arg11[%c0_10, %c0_11] : memref<4x896xf32, #tpu.memory_space<vmem>>, vector<4x128xf32>
    tpu.vector_store %arg11[%c0_10, %c0_11], %9 {strides = array<i32>} : memref<4x896xf32, #tpu.memory_space<vmem>>, vector<4x128xf32>,
    %cst_12 = arith.constant 0.000000e+00 : f32
    %11 = vector.broadcast %cst_12 : f32 to vector<4x128xf32>
    %c0_13 = arith.constant 0 : index
    %c768_14 = arith.constant 768 : index
    %12 = vector.load %arg11[%c0_13, %c768_14] : memref<4x896xf32, #tpu.memory_space<vmem>>, vector<4x128xf32>
    tpu.vector_store %arg11[%c0_13, %c768_14], %11 {strides = array<i32>} : memref<4x896xf32, #tpu.memory_space<vmem>>, vector<4x128xf32>,
    %c0_15 = arith.constant 0 : index
    %c0_16 = arith.constant 0 : index
    %13 = vector.load %arg1[%c0_15, %c0_16] : memref<8x64xf32, #tpu.memory_space<vmem>>, vector<8x64xf32>
    %c0_17 = arith.constant 0 : index
    %c0_18 = arith.constant 0 : index
    %14 = vector.load %arg3[%c0_17, %c0_18] : memref<64x256xf32, #tpu.memory_space<vmem>>, vector<64x256xf32>
    %cst_19 = arith.constant dense<0.000000e+00> : vector<8x256xf32>
    %15 = tpu.matmul %13, %14, %cst_19 {dimension_numbers = #tpu.dot_dimension_numbers<[1], [0], [0], [1], [0, 0, 1, 1], [], []>} : vector<8x64xf32>, vector<64x256xf32>, vector<8x256xf32> -> vector<8x256xf32>
    %c0_20 = arith.constant 0 : index
    %c0_21 = arith.constant 0 : index
    %16 = vector.load %arg2[%c0_20, %c0_21] : memref<8x256xf32, #tpu.memory_space<vmem>>, vector<4x256xf32>
    %c0_22 = arith.constant 0 : index
    %c128 = arith.constant 128 : index
    %17 = vector.load %arg10[%c0_22, %c128] : memref<8x896xf32, #tpu.memory_space<vmem>>, vector<4x256xf32>
    tpu.vector_store %arg10[%c0_22, %c128], %16 {strides = array<i32>} : memref<8x896xf32, #tpu.memory_space<vmem>>, vector<4x256xf32>,
    %18 = vector.extract_strided_slice %15 {offsets = [0, 0], sizes = [4, 256], strides = [1, 1]} : vector<8x256xf32> to vector<4x256xf32>
    %c4 = arith.constant 4 : index
    %c128_23 = arith.constant 128 : index
    %19 = vector.load %arg10[%c4, %c128_23] : memref<8x896xf32, #tpu.memory_space<vmem>>, vector<4x256xf32>
    tpu.vector_store %arg10[%c4, %c128_23], %18 {strides = array<i32>} : memref<8x896xf32, #tpu.memory_space<vmem>>, vector<4x256xf32>,
    %c4_24 = arith.constant 4 : index
    %c0_25 = arith.constant 0 : index
    %20 = vector.load %arg2[%c4_24, %c0_25] : memref<8x256xf32, #tpu.memory_space<vmem>>, vector<4x256xf32>
    %c0_26 = arith.constant 0 : index
    %c512 = arith.constant 512 : index
    %21 = vector.load %arg10[%c0_26, %c512] : memref<8x896xf32, #tpu.memory_space<vmem>>, vector<4x256xf32>
    tpu.vector_store %arg10[%c0_26, %c512], %20 {strides = array<i32>} : memref<8x896xf32, #tpu.memory_space<vmem>>, vector<4x256xf32>,
    %22 = vector.extract_strided_slice %15 {offsets = [4, 0], sizes = [4, 256], strides = [1, 1]} : vector<8x256xf32> to vector<4x256xf32>
    %c4_27 = arith.constant 4 : index
    %c512_28 = arith.constant 512 : index
    %23 = vector.load %arg10[%c4_27, %c512_28] : memref<8x896xf32, #tpu.memory_space<vmem>>, vector<4x256xf32>
    tpu.vector_store %arg10[%c4_27, %c512_28], %22 {strides = array<i32>} : memref<8x896xf32, #tpu.memory_space<vmem>>, vector<4x256xf32>,
    %c0_29 = arith.constant 0 : index
    %c0_30 = arith.constant 0 : index
    %24 = vector.load %arg6[%c0_29, %c0_30] : memref<4x1xf32, #tpu.memory_space<vmem>>, vector<4x1xf32>
    %c0_31 = arith.constant 0 : index
    %c111 = arith.constant 111 : index
    %25 = vector.load %arg10[%c0_31, %c111] : memref<8x896xf32, #tpu.memory_space<vmem>>, vector<8x640xf32>
    %26 = vector.broadcast %0 : vector<1x640xf32> to vector<8x640xf32>
    %27 = arith.mulf %25, %26 : vector<8x640xf32>
    %c0_32 = arith.constant 0 : index
    %c112 = arith.constant 112 : index
    %28 = vector.load %arg10[%c0_32, %c112] : memref<8x896xf32, #tpu.memory_space<vmem>>, vector<8x640xf32>
    %c0_33 = arith.constant 0 : index
    %c113 = arith.constant 113 : index
    %29 = vector.load %arg10[%c0_33, %c113] : memref<8x896xf32, #tpu.memory_space<vmem>>, vector<8x640xf32>
    %30 = vector.broadcast %1 : vector<1x640xf32> to vector<8x640xf32>
    %31 = arith.mulf %29, %30 : vector<8x640xf32>
    %32 = tpu.concatenate %27, %28, %31 in 0 : vector<8x640xf32>, vector<8x640xf32>, vector<8x640xf32> -> vector<24x640xf32>
    %c0_34 = arith.constant 0 : index
    %c0_35 = arith.constant 0 : index
    %33 = vector.load %arg5[%c0_34, %c0_35] : memref<4x72xf32, #tpu.memory_space<vmem>>, vector<4x24xf32>
    %cst_36 = arith.constant dense<0.000000e+00> : vector<4x640xf32>
    %34 = tpu.matmul %33, %32, %cst_36 {dimension_numbers = #tpu.dot_dimension_numbers<[1], [0], [0], [1], [0, 0, 1, 1], [], []>} : vector<4x24xf32>, vector<24x640xf32>, vector<4x640xf32> -> vector<4x640xf32>
    %c0_37 = arith.constant 0 : index
    %c127 = arith.constant 127 : index
    %35 = vector.load %arg10[%c0_37, %c127] : memref<8x896xf32, #tpu.memory_space<vmem>>, vector<8x640xf32>
    %36 = vector.broadcast %0 : vector<1x640xf32> to vector<8x640xf32>
    %37 = arith.mulf %35, %36 : vector<8x640xf32>
    %c0_38 = arith.constant 0 : index
    %c128_39 = arith.constant 128 : index
    %38 = vector.load %arg10[%c0_38, %c128_39] : memref<8x896xf32, #tpu.memory_space<vmem>>, vector<8x640xf32>
    %c0_40 = arith.constant 0 : index
    %c129 = arith.constant 129 : index
    %39 = vector.load %arg10[%c0_40, %c129] : memref<8x896xf32, #tpu.memory_space<vmem>>, vector<8x640xf32>
    %40 = vector.broadcast %1 : vector<1x640xf32> to vector<8x640xf32>
    %41 = arith.mulf %39, %40 : vector<8x640xf32>
    %42 = tpu.concatenate %37, %38, %41 in 0 : vector<8x640xf32>, vector<8x640xf32>, vector<8x640xf32> -> vector<24x640xf32>
    %c0_41 = arith.constant 0 : index
    %c24 = arith.constant 24 : index
    %43 = vector.load %arg5[%c0_41, %c24] : memref<4x72xf32, #tpu.memory_space<vmem>>, vector<4x24xf32>
    %cst_42 = arith.constant dense<0.000000e+00> : vector<4x640xf32>
    %44 = tpu.matmul %43, %42, %cst_42 {dimension_numbers = #tpu.dot_dimension_numbers<[1], [0], [0], [1], [0, 0, 1, 1], [], []>} : vector<4x24xf32>, vector<24x640xf32>, vector<4x640xf32> -> vector<4x640xf32>
    %45 = arith.addf %34, %44 : vector<4x640xf32>
    %c0_43 = arith.constant 0 : index
    %c143 = arith.constant 143 : index
    %46 = vector.load %arg10[%c0_43, %c143] : memref<8x896xf32, #tpu.memory_space<vmem>>, vector<8x640xf32>
    %47 = vector.broadcast %0 : vector<1x640xf32> to vector<8x640xf32>
    %48 = arith.mulf %46, %47 : vector<8x640xf32>
    %c0_44 = arith.constant 0 : index
    %c144 = arith.constant 144 : index
    %49 = vector.load %arg10[%c0_44, %c144] : memref<8x896xf32, #tpu.memory_space<vmem>>, vector<8x640xf32>
    %c0_45 = arith.constant 0 : index
    %c145 = arith.constant 145 : index
    %50 = vector.load %arg10[%c0_45, %c145] : memref<8x896xf32, #tpu.memory_space<vmem>>, vector<8x640xf32>
    %51 = vector.broadcast %1 : vector<1x640xf32> to vector<8x640xf32>
    %52 = arith.mulf %50, %51 : vector<8x640xf32>
    %53 = tpu.concatenate %48, %49, %52 in 0 : vector<8x640xf32>, vector<8x640xf32>, vector<8x640xf32> -> vector<24x640xf32>
    %c0_46 = arith.constant 0 : index
    %c48 = arith.constant 48 : index
    %54 = vector.load %arg5[%c0_46, %c48] : memref<4x72xf32, #tpu.memory_space<vmem>>, vector<4x24xf32>
    %cst_47 = arith.constant dense<0.000000e+00> : vector<4x640xf32>
    %55 = tpu.matmul %54, %53, %cst_47 {dimension_numbers = #tpu.dot_dimension_numbers<[1], [0], [0], [1], [0, 0, 1, 1], [], []>} : vector<4x24xf32>, vector<24x640xf32>, vector<4x640xf32> -> vector<4x640xf32>
    %56 = arith.addf %45, %55 : vector<4x640xf32>
    %57 = vector.broadcast %24 : vector<4x1xf32> to vector<4x640xf32>
    %58 = arith.addf %56, %57 : vector<4x640xf32>
    %cst_48 = arith.constant 0.000000e+00 : f32
    %59 = vector.broadcast %cst_48 : f32 to vector<4x640xf32>
    %60 = arith.maximumf %58, %59 : vector<4x640xf32>
    %61 = vector.broadcast %2 : vector<1x640xf32> to vector<4x640xf32>
    %62 = arith.mulf %60, %61 : vector<4x640xf32>
    %c0_49 = arith.constant 0 : index
    %c128_50 = arith.constant 128 : index
    %63 = vector.load %arg11[%c0_49, %c128_50] : memref<4x896xf32, #tpu.memory_space<vmem>>, vector<4x640xf32>
    tpu.vector_store %arg11[%c0_49, %c128_50], %62 {strides = array<i32>} : memref<4x896xf32, #tpu.memory_space<vmem>>, vector<4x640xf32>,
    %c0_51 = arith.constant 0 : index
    %c0_52 = arith.constant 0 : index
    %64 = vector.load %arg8[%c0_51, %c0_52] : memref<8x1xf32, #tpu.memory_space<vmem>>, vector<8x1xf32>
    %c0_53 = arith.constant 0 : index
    %c111_54 = arith.constant 111 : index
    %65 = vector.load %arg11[%c0_53, %c111_54] : memref<4x896xf32, #tpu.memory_space<vmem>>, vector<4x640xf32>
    %66 = vector.broadcast %0 : vector<1x640xf32> to vector<4x640xf32>
    %67 = arith.mulf %65, %66 : vector<4x640xf32>
    %c0_55 = arith.constant 0 : index
    %c112_56 = arith.constant 112 : index
    %68 = vector.load %arg11[%c0_55, %c112_56] : memref<4x896xf32, #tpu.memory_space<vmem>>, vector<4x640xf32>
    %c0_57 = arith.constant 0 : index
    %c113_58 = arith.constant 113 : index
    %69 = vector.load %arg11[%c0_57, %c113_58] : memref<4x896xf32, #tpu.memory_space<vmem>>, vector<4x640xf32>
    %70 = vector.broadcast %1 : vector<1x640xf32> to vector<4x640xf32>
    %71 = arith.mulf %69, %70 : vector<4x640xf32>
    %72 = tpu.concatenate %67, %68, %71 in 0 : vector<4x640xf32>, vector<4x640xf32>, vector<4x640xf32> -> vector<12x640xf32>
    %c0_59 = arith.constant 0 : index
    %c0_60 = arith.constant 0 : index
    %73 = vector.load %arg7[%c0_59, %c0_60] : memref<8x36xf32, #tpu.memory_space<vmem>>, vector<8x12xf32>
    %cst_61 = arith.constant dense<0.000000e+00> : vector<8x640xf32>
    %74 = tpu.matmul %73, %72, %cst_61 {dimension_numbers = #tpu.dot_dimension_numbers<[1], [0], [0], [1], [0, 0, 1, 1], [], []>} : vector<8x12xf32>, vector<12x640xf32>, vector<8x640xf32> -> vector<8x640xf32>
    %c0_62 = arith.constant 0 : index
    %c127_63 = arith.constant 127 : index
    %75 = vector.load %arg11[%c0_62, %c127_63] : memref<4x896xf32, #tpu.memory_space<vmem>>, vector<4x640xf32>
    %76 = vector.broadcast %0 : vector<1x640xf32> to vector<4x640xf32>
    %77 = arith.mulf %75, %76 : vector<4x640xf32>
    %c0_64 = arith.constant 0 : index
    %c128_65 = arith.constant 128 : index
    %78 = vector.load %arg11[%c0_64, %c128_65] : memref<4x896xf32, #tpu.memory_space<vmem>>, vector<4x640xf32>
    %c0_66 = arith.constant 0 : index
    %c129_67 = arith.constant 129 : index
    %79 = vector.load %arg11[%c0_66, %c129_67] : memref<4x896xf32, #tpu.memory_space<vmem>>, vector<4x640xf32>
    %80 = vector.broadcast %1 : vector<1x640xf32> to vector<4x640xf32>
    %81 = arith.mulf %79, %80 : vector<4x640xf32>
    %82 = tpu.concatenate %77, %78, %81 in 0 : vector<4x640xf32>, vector<4x640xf32>, vector<4x640xf32> -> vector<12x640xf32>
    %c0_68 = arith.constant 0 : index
    %c12 = arith.constant 12 : index
    %83 = vector.load %arg7[%c0_68, %c12] : memref<8x36xf32, #tpu.memory_space<vmem>>, vector<8x12xf32>
    %cst_69 = arith.constant dense<0.000000e+00> : vector<8x640xf32>
    %84 = tpu.matmul %83, %82, %cst_69 {dimension_numbers = #tpu.dot_dimension_numbers<[1], [0], [0], [1], [0, 0, 1, 1], [], []>} : vector<8x12xf32>, vector<12x640xf32>, vector<8x640xf32> -> vector<8x640xf32>
    %85 = arith.addf %74, %84 : vector<8x640xf32>
    %c0_70 = arith.constant 0 : index
    %c143_71 = arith.constant 143 : index
    %86 = vector.load %arg11[%c0_70, %c143_71] : memref<4x896xf32, #tpu.memory_space<vmem>>, vector<4x640xf32>
    %87 = vector.broadcast %0 : vector<1x640xf32> to vector<4x640xf32>
    %88 = arith.mulf %86, %87 : vector<4x640xf32>
    %c0_72 = arith.constant 0 : index
    %c144_73 = arith.constant 144 : index
    %89 = vector.load %arg11[%c0_72, %c144_73] : memref<4x896xf32, #tpu.memory_space<vmem>>, vector<4x640xf32>
    %c0_74 = arith.constant 0 : index
    %c145_75 = arith.constant 145 : index
    %90 = vector.load %arg11[%c0_74, %c145_75] : memref<4x896xf32, #tpu.memory_space<vmem>>, vector<4x640xf32>
    %91 = vector.broadcast %1 : vector<1x640xf32> to vector<4x640xf32>
    %92 = arith.mulf %90, %91 : vector<4x640xf32>
    %93 = tpu.concatenate %88, %89, %92 in 0 : vector<4x640xf32>, vector<4x640xf32>, vector<4x640xf32> -> vector<12x640xf32>
    %c0_76 = arith.constant 0 : index
    %c24_77 = arith.constant 24 : index
    %94 = vector.load %arg7[%c0_76, %c24_77] : memref<8x36xf32, #tpu.memory_space<vmem>>, vector<8x12xf32>
    %cst_78 = arith.constant dense<0.000000e+00> : vector<8x640xf32>
    %95 = tpu.matmul %94, %93, %cst_78 {dimension_numbers = #tpu.dot_dimension_numbers<[1], [0], [0], [1], [0, 0, 1, 1], [], []>} : vector<8x12xf32>, vector<12x640xf32>, vector<8x640xf32> -> vector<8x640xf32>
    %96 = arith.addf %85, %95 : vector<8x640xf32>
    %97 = vector.broadcast %64 : vector<8x1xf32> to vector<8x640xf32>
    %98 = arith.addf %96, %97 : vector<8x640xf32>
    %cst_79 = arith.constant 0.000000e+00 : f32
    %99 = vector.broadcast %cst_79 : f32 to vector<8x640xf32>
    %100 = arith.maximumf %98, %99 : vector<8x640xf32>
    %101 = vector.extract_strided_slice %100 {offsets = [0, 0], sizes = [8, 256], strides = [1, 1]} : vector<8x640xf32> to vector<8x256xf32>
    %c0_80 = arith.constant 0 : index
    %c0_81 = arith.constant 0 : index
    %102 = vector.load %arg9[%c0_80, %c0_81] : memref<16x256xf32, #tpu.memory_space<vmem>>, vector<8x256xf32>
    tpu.vector_store %arg9[%c0_80, %c0_81], %101 {strides = array<i32>} : memref<16x256xf32, #tpu.memory_space<vmem>>, vector<8x256xf32>,
    %103 = vector.extract_strided_slice %100 {offsets = [0, 384], sizes = [8, 256], strides = [1, 1]} : vector<8x640xf32> to vector<8x256xf32>
    %c8 = arith.constant 8 : index
    %c0_82 = arith.constant 0 : index
    %104 = vector.load %arg9[%c8, %c0_82] : memref<16x256xf32, #tpu.memory_space<vmem>>, vector<8x256xf32>
    tpu.vector_store %arg9[%c8, %c0_82], %103 {strides = array<i32>} : memref<16x256xf32, #tpu.memory_space<vmem>>, vector<8x256xf32>,
    return
  }
  func.func @transform_0(%arg0: i32) -> (i32, i32) {
    %c0_i32 = arith.constant 0 : i32
    %c0_i32_0 = arith.constant 0 : i32
    %c0_i32_1 = arith.constant 0 : i32
    return %c0_i32, %c0_i32_0 : i32, i32
  }
  func.func @transform_1(%arg0: i32) -> (i32, i32) {
    %c0_i32 = arith.constant 0 : i32
    %c0_i32_0 = arith.constant 0 : i32
    %c0_i32_1 = arith.constant 0 : i32
    return %c0_i32, %c0_i32_0 : i32, i32
  }
  func.func @transform_2(%arg0: i32) -> (i32, i32) {
    %c0_i32 = arith.constant 0 : i32
    %c0_i32_0 = arith.constant 0 : i32
    %c0_i32_1 = arith.constant 0 : i32
    return %c0_i32, %c0_i32_0 : i32, i32
  }
  func.func @transform_3(%arg0: i32) -> (i32, i32) {
    %c0_i32 = arith.constant 0 : i32
    %c0_i32_0 = arith.constant 0 : i32
    %c0_i32_1 = arith.constant 0 : i32
    return %c0_i32, %c0_i32_0 : i32, i32
  }
  func.func @transform_4(%arg0: i32) -> (i32, i32) {
    %c0_i32 = arith.constant 0 : i32
    %c0_i32_0 = arith.constant 0 : i32
    %c0_i32_1 = arith.constant 0 : i32
    return %c0_i32, %c0_i32_0 : i32, i32
  }
  func.func @transform_5(%arg0: i32) -> (i32, i32) {
    %c0_i32 = arith.constant 0 : i32
    %c0_i32_0 = arith.constant 0 : i32
    %c0_i32_1 = arith.constant 0 : i32
    return %c0_i32, %c0_i32_0 : i32, i32
  }
  func.func @transform_6(%arg0: i32) -> (i32, i32) {
    %c0_i32 = arith.constant 0 : i32
    %c0_i32_0 = arith.constant 0 : i32
    %c0_i32_1 = arith.constant 0 : i32
    return %c0_i32, %c0_i32_0 : i32, i32
  }
  func.func @transform_7(%arg0: i32) -> (i32, i32) {
    %c0_i32 = arith.constant 0 : i32
    %c0_i32_0 = arith.constant 0 : i32
    %c0_i32_1 = arith.constant 0 : i32
    return %c0_i32, %c0_i32_0 : i32, i32
  }
  func.func @transform_8(%arg0: i32) -> (i32, i32) {
    %c0_i32 = arith.constant 0 : i32
    %c0_i32_0 = arith.constant 0 : i32
    %c0_i32_1 = arith.constant 0 : i32
    return %c0_i32, %c0_i32_0 : i32, i32
  }
}

</mosaic_0001>

<llo_original>
// kernel: tpu_custom_call.1
$region0: #{tpu_custom_call.1}
  #allocation0 [shape = 'u32[]', space=smem, size = 0x4, offset = 0x4, fixed_abs, tag = 'smem constant byte address 0x4 - core index']
  #allocation1 [shape = 'u32[144,128]{1,0:T(1,128)}', space=vmem, size = 0x12000, scoped, tag = 'internal scratch']
  #allocation2 [shape = 'f32[8,896]{1,0:T(8,128)}', space=vmem, size = 0x7000, scoped, tag = 'scratch operand']
  #allocation3 [shape = 'f32[4,896]{1,0:T(4,128)}', space=vmem, size = 0x3800, scoped, tag = 'scratch operand']
  %s0 = inlined_call_operand.vmem [shape: f32[8,64], index: 0, kind: input, shape index: {}]
  %s1 = inlined_call_operand.hbm [shape: f32[8,256], index: 1, kind: input, shape index: {}]
  %s2 = inlined_call_operand.hbm [shape: f32[64,256], index: 2, kind: input, shape index: {}]
  %s3 = inlined_call_operand.hbm [shape: f32[3,640], index: 3, kind: input, shape index: {}]
  %s4 = inlined_call_operand.vmem [shape: f32[4,72], index: 4, kind: input, shape index: {}]
  %s5 = inlined_call_operand.vmem [shape: f32[4,1], index: 5, kind: input, shape index: {}]
  %s6 = inlined_call_operand.vmem [shape: f32[8,36], index: 6, kind: input, shape index: {}]
  %s7 = inlined_call_operand.vmem [shape: f32[8,1], index: 7, kind: input, shape index: {}]
  %s8 = inlined_call_operand.hbm [shape: f32[16,256], index: 8, kind: output, shape index: {}]
  %s9 = sld [smem:[#allocation0]]
  $region54: #{tpu_custom_call.1} parent=0
    _
  %s11 = ssub.s32 1, %s9
  %s12 = scalar_select 0, %s11, %s9
  $region1: #{tpu_custom_call.1} parent=0
    #allocation4 [shape = 'u8[8192]{0}', space=vmem, size = 0x2000, scoped, tag = 'input window, operand 1, single buffered']
    #allocation5 [shape = 's32[1]{0}', space=sflag, size = 0x4, scoped, tag = 'scoped memory for tpu_custom_call.1']
    #allocation6 [shape = 's32[1]{0}', space=sflag, size = 0x4, scoped, tag = 'scoped memory for tpu_custom_call.1']
    #allocation7 [shape = 'u8[65536]{0}', space=vmem, size = 0x10000, scoped, tag = 'input window, operand 2, single buffered']
    #allocation8 [shape = 's32[1]{0}', space=sflag, size = 0x4, scoped, tag = 'scoped memory for tpu_custom_call.1']
    #allocation9 [shape = 'u8[10240]{0}', space=vmem, size = 0x2800, scoped, tag = 'input window, operand 3, single buffered']
    #allocation10 [shape = 'u8[16384]{0}', space=vmem, size = 0x4000, scoped, tag = 'output window, operand 0, single buffered']
    %13 = vsyncpa [#allocation5], 0
    %14 = vsyncpa [#allocation8], 0
    %15 = vsyncpa [#allocation6], 0
    // Predicated region
    $region2: #{tpu_custom_call.1} parent=1 // pred_check
      _
    $region3: #{tpu_custom_call.1} parent=1 // pred_check_branch
      %17 = sbr.rel (0) target = $region5
    $region4: #{tpu_custom_call.1} parent=1 // pred_region
      _
    $region5: #{tpu_custom_call.1} parent=1 // pred_fallthru
      _
    // Predicated region
    $region6: #{tpu_custom_call.1} parent=1 // pred_check
      _
    $region7: #{tpu_custom_call.1} parent=1 // pred_check_branch
      %19 = sbr.rel (0) target = $region9
    $region8: #{tpu_custom_call.1} parent=1 // pred_region
      %s21 = ssub.s32 256, 256
      %22 = vsyncadd [#allocation5], %s21
      %s24 = sshll.u32 [#allocation4], 4
      %s25 = int_to_ptr.vmem [resolvable:$true] %s24
      %27 = dma.hbm_to_vmem [thread:$0]  %s1, 256, %s25, [#allocation5]
    $region9: #{tpu_custom_call.1} parent=1 // pred_fallthru
      _
    // Predicated region
    $region10: #{tpu_custom_call.1} parent=1 // pred_check
      _
    $region11: #{tpu_custom_call.1} parent=1 // pred_check_branch
      %29 = sbr.rel (0) target = $region13
    $region12: #{tpu_custom_call.1} parent=1 // pred_region
      %s31 = ssub.s32 2048, 2048
      %32 = vsyncadd [#allocation8], %s31
      %s33 = sshll.u32 [#allocation7], 4
      %s34 = int_to_ptr.vmem [resolvable:$true] %s33
      %39 = dma.hbm_to_vmem [thread:$0]  %s2, 2048, %s34, [#allocation8], 256, 256, 16
    $region13: #{tpu_custom_call.1} parent=1 // pred_fallthru
      _
    // Predicated region
    $region14: #{tpu_custom_call.1} parent=1 // pred_check
      _
    $region15: #{tpu_custom_call.1} parent=1 // pred_check_branch
      %41 = sbr.rel (0) target = $region17
    $region16: #{tpu_custom_call.1} parent=1 // pred_region
      %s43 = ssub.s32 320, 320
      %44 = vsyncadd [#allocation8], %s43
      %s46 = sshll.u32 [#allocation9], 4
      %s47 = int_to_ptr.vmem [resolvable:$true] %s46
      %49 = dma.hbm_to_vmem [thread:$0]  %s3, 320, %s47, [#allocation8]
    $region17: #{tpu_custom_call.1} parent=1 // pred_fallthru
      _
    // Predicated region
    $region18: #{tpu_custom_call.1} parent=1 // pred_check
      _
    $region19: #{tpu_custom_call.1} parent=1 // pred_check_branch
      %51 = sbr.rel (0) target = $region21
    $region20: #{tpu_custom_call.1} parent=1 // pred_region
      _
    $region21: #{tpu_custom_call.1} parent=1 // pred_fallthru
      _
    // Predicated region
    $region22: #{tpu_custom_call.1} parent=1 // pred_check
      _
    $region23: #{tpu_custom_call.1} parent=1 // pred_check_branch
      %53 = sbr.rel (0) target = $region25
    $region24: #{tpu_custom_call.1} parent=1 // pred_region
      _
    $region25: #{tpu_custom_call.1} parent=1 // pred_fallthru
      _
    // Predicated region
    $region26: #{tpu_custom_call.1} parent=1 // pred_check
      _
    $region27: #{tpu_custom_call.1} parent=1 // pred_check_branch
      %55 = sbr.rel (0) target = $region29
    $region28: #{tpu_custom_call.1} parent=1 // pred_region
      _
    $region29: #{tpu_custom_call.1} parent=1 // pred_fallthru
      _
    // Predicated region
    $region30: #{tpu_custom_call.1} parent=1 // pred_check
      _
    $region31: #{tpu_custom_call.1} parent=1 // pred_check_branch
      %57 = sbr.rel (0) target = $region33
    $region32: #{tpu_custom_call.1} parent=1 // pred_region
      _
    $region33: #{tpu_custom_call.1} parent=1 // pred_fallthru
      _
    // Predicated region
    $region34: #{tpu_custom_call.1} parent=1 // pred_check
      _
    $region35: #{tpu_custom_call.1} parent=1 // pred_check_branch
      %59 = sbr.rel (0) target = $region37
    $region36: #{tpu_custom_call.1} parent=1 // pred_region
      %60 = dma.done [#allocation5], 256
    $region37: #{tpu_custom_call.1} parent=1 // pred_fallthru
      _
    // Predicated region
    $region38: #{tpu_custom_call.1} parent=1 // pred_check
      _
    $region39: #{tpu_custom_call.1} parent=1 // pred_check_branch
      %62 = sbr.rel (0) target = $region41
    $region40: #{tpu_custom_call.1} parent=1 // pred_region
      %63 = dma.done [#allocation8], 2048
    $region41: #{tpu_custom_call.1} parent=1 // pred_fallthru
      _
    // Predicated region
    $region42: #{tpu_custom_call.1} parent=1 // pred_check
      _
    $region43: #{tpu_custom_call.1} parent=1 // pred_check_branch
      %65 = sbr.rel (0) target = $region45
    $region44: #{tpu_custom_call.1} parent=1 // pred_region
      %66 = dma.done [#allocation8], 320
    $region45: #{tpu_custom_call.1} parent=1 // pred_fallthru
      _
    %v67 = vld [vmem:[#allocation9] ss:$4 sm:$0x1f]
    %s68 = scalar_lea.vmem [#allocation9], 1
    %v69 = vld [vmem:[%s68] ss:$4 sm:$0x1f]
    %s70 = scalar_lea.vmem [#allocation9], 2
    %v71 = vld [vmem:[%s70] ss:$4 sm:$0x1f]
    %72 = vst [vmem:[#allocation2] sm:$0xff] 0.0
    %73 = vst [vmem:[#allocation2 + $0x18] sm:$0xff] 0.0
    %74 = vst [vmem:[#allocation2 + $0x30] sm:$0xff] 0.0
    %75 = vst [vmem:[#allocation3] sm:$0xf] 0.0
    %76 = vst [vmem:[#allocation3 + $0x18] sm:$0xf] 0.0
    %v77 = vld [vmem:[%s0] sm:$0xff]
    %v78 = vld [vmem:[#allocation7] sm:$0xff]
    %v79 = vld [vmem:[#allocation7 + $0x8] sm:$0xff]
    %v80 = vld [vmem:[#allocation7 + $0x10] sm:$0xff]
    %v81 = vld [vmem:[#allocation7 + $0x18] sm:$0xff]
    %v82 = vld [vmem:[#allocation7 + $0x20] sm:$0xff]
    %v83 = vld [vmem:[#allocation7 + $0x28] sm:$0xff]
    %v84 = vld [vmem:[#allocation7 + $0x30] sm:$0xff]
    %v85 = vld [vmem:[#allocation7 + $0x38] sm:$0xff]
    %v86 = vld [vmem:[#allocation7 + $0x40] sm:$0xff]
    %v87 = vld [vmem:[#allocation7 + $0x48] sm:$0xff]
    %v88 = vld [vmem:[#allocation7 + $0x50] sm:$0xff]
    %v89 = vld [vmem:[#allocation7 + $0x58] sm:$0xff]
    %v90 = vld [vmem:[#allocation7 + $0x60] sm:$0xff]
    %v91 = vld [vmem:[#allocation7 + $0x68] sm:$0xff]
    %v92 = vld [vmem:[#allocation7 + $0x70] sm:$0xff]
    %v93 = vld [vmem:[#allocation7 + $0x78] sm:$0xff]
    %vm94 = vcmask 523264
    %v96 = vsel %vm94, %v77, 0
    %98 = vmatprep.subr.mxu0 0.0
    %99 = vmatpush1.msra.mxu0 0.0
    %100 = vmatprep.subr.mxu0 0.0
    %101 = vmatpush1.msra.mxu0 0.0
    %102 = vmatprep.subr.mxu0 0.0
    %103 = vmatpush1.msra.mxu0 0.0
    %104 = vmatprep.subr.mxu0 0.0
    %105 = vmatpush1.msra.mxu0 0.0
    %106 = vmatprep.subr.mxu0 0.0
    %107 = vmatpush1.msra.mxu0 0.0
    %108 = vmatprep.subr.mxu0 0.0
    %109 = vmatpush1.msra.mxu0 0.0
    %110 = vmatprep.subr.mxu0 0.0
    %111 = vmatpush1.msra.mxu0 0.0
    %112 = vmatprep.subr.mxu0 0.0
    %113 = vmatpush1.msra.mxu0 0.0
    %114 = vmatprep.subr.mxu0 %v93
    %115 = vmatpush1.msra.mxu0 %v92
    %116 = vmatprep.subr.mxu0 %v91
    %117 = vmatpush1.msra.mxu0 %v90
    %118 = vmatprep.subr.mxu0 %v89
    %119 = vmatpush1.msra.mxu0 %v88
    %120 = vmatprep.subr.mxu0 %v87
    %121 = vmatpush1.msra.mxu0 %v86
    %122 = vmatprep.subr.mxu0 %v85
    %123 = vmatpush1.msra.mxu0 %v84
    %124 = vmatprep.subr.mxu0 %v83
    %125 = vmatpush1.msra.mxu0 %v82
    %126 = vmatprep.subr.mxu0 %v81
    %127 = vmatpush1.msra.mxu0 %v80
    %128 = vmatprep.subr.mxu0 %v79
    %129 = vmatpush1.msra.mxu0 %v78
    %130 = vmatprep.subr.mxu0 0.0
    %131 = vmatpush2.msra.mxu0 0.0
    %132 = vmatprep.subr.mxu0 0.0
    %133 = vmatpush2.msra.mxu0 0.0
    %134 = vmatprep.subr.mxu0 0.0
    %135 = vmatpush2.msra.mxu0 0.0
    %136 = vmatprep.subr.mxu0 0.0
    %137 = vmatpush2.msra.mxu0 0.0
    %138 = vmatprep.subr.mxu0 0.0
    %139 = vmatpush2.msra.mxu0 0.0
    %140 = vmatprep.subr.mxu0 0.0
    %141 = vmatpush2.msra.mxu0 0.0
    %142 = vmatprep.subr.mxu0 0.0
    %143 = vmatpush2.msra.mxu0 0.0
    %144 = vmatprep.subr.mxu0 0.0
    %145 = vmatpush2.msra.mxu0 0.0
    %146 = vmatprep.subr.mxu0 0.0
    %147 = vmatpush2.msra.mxu0 0.0
    %148 = vmatprep.subr.mxu0 0.0
    %149 = vmatpush2.msra.mxu0 0.0
    %150 = vmatprep.subr.mxu0 0.0
    %151 = vmatpush2.msra.mxu0 0.0
    %152 = vmatprep.subr.mxu0 0.0
    %153 = vmatpush2.msra.mxu0 0.0
    %154 = vmatprep.subr.mxu0 0.0
    %155 = vmatpush2.msra.mxu0 0.0
    %156 = vmatprep.subr.mxu0 0.0
    %157 = vmatpush2.msra.mxu0 0.0
    %158 = vmatprep.subr.mxu0 0.0
    %159 = vmatpush2.msra.mxu0 0.0
    %160 = vmatprep.subr.mxu0 0.0
    %161 = vmatpush2.msra.mxu0 0.0
    %162 = vmatprep.mubr.f32.mxu0 0.0
    %163 = vmatmul.mubr.f32.gmra.mxu0 %v96
    %v164 = vpop.f32.mrf.mxu0
    %v165 = vadd.f32 0.0, %v164
    %v166 = vpop.f32.mrf.mxu0
    %v167 = vadd.f32 0.0, %v166
    %168 = vdwg.mxu0
    %v169 = vld [vmem:[#allocation4] sm:$0xf]
    %v170 = vld [vmem:[#allocation4 + $0x8] sm:$0xf]
    %171 = vst [vmem:[#allocation2 + $0x8] sm:$0xf] %v169
    %172 = vst [vmem:[#allocation2 + $0x10] sm:$0xf] %v170
    %v175 = vrot.slane %v165, 4
    %v176 = vrot.slane %v167, 4
    %179 = vst [vmem:[#allocation2 + $0x8] sm:$0xf0] %v175
    %180 = vst [vmem:[#allocation2 + $0x10] sm:$0xf0] %v176
    %v181 = vld [vmem:[#allocation4] sm:$0xf0]
    %v182 = vld [vmem:[#allocation4 + $0x8] sm:$0xf0]
    %v185 = vrot.slane %v181, 4
    %v186 = vrot.slane %v182, 4
    %189 = vst [vmem:[#allocation2 + $0x20] sm:$0xf] %v185
    %190 = vst [vmem:[#allocation2 + $0x28] sm:$0xf] %v186
    %191 = vst [vmem:[#allocation2 + $0x20] sm:$0xf0] %v165
    %192 = vst [vmem:[#allocation2 + $0x28] sm:$0xf0] %v167
    %v193 = vld [vmem:[%s5] sm:$0xf]
    %v194 = vld [vmem:[#allocation2] sm:$0xff]
    %v195 = vld [vmem:[#allocation2 + $0x8] sm:$0xff]
    %v196 = vld [vmem:[#allocation2 + $0x10] sm:$0xff]
    %v197 = vld [vmem:[#allocation2 + $0x18] sm:$0xff]
    %v198 = vld [vmem:[#allocation2 + $0x20] sm:$0xff]
    %v199 = vld [vmem:[#allocation2 + $0x28] sm:$0xff]
    %v201 = vlaneseq
    %v202 = vshrl.u32 %v201, 7
    %v203 = vsub.s32 0, %v202
    %v204 = vrot.slane %v67, %v203
    %v205 = vlaneseq
    %v206 = vshrl.u32 %v205, 7
    %v207 = vsub.s32 1, %v206
    %v208 = vrot.slane %v67, %v207
    %v209 = vlaneseq
    %v210 = vshrl.u32 %v209, 7
    %v211 = vsub.s32 2, %v210
    %v212 = vrot.slane %v67, %v211
    %v213 = vlaneseq
    %v214 = vshrl.u32 %v213, 7
    %v215 = vsub.s32 3, %v214
    %v216 = vrot.slane %v67, %v215
    %v217 = vlaneseq
    %v218 = vshrl.u32 %v217, 7
    %v219 = vsub.s32 4, %v218
    %v220 = vrot.slane %v67, %v219
    %221 = vrot.lane.b32.xlu0 %v204, 111
    %v222 = vpop.permute.xlu0 %221
    %223 = vrot.lane.b32.xlu0 %v208, 111
    %v224 = vpop.permute.xlu0 %223
    %225 = vrot.lane.b32.xlu0 %v212, 111
    %v226 = vpop.permute.xlu0 %225
    %227 = vrot.lane.b32.xlu0 %v216, 111
    %v228 = vpop.permute.xlu0 %227
    %229 = vrot.lane.b32.xlu0 %v220, 111
    %v230 = vpop.permute.xlu0 %229
    %vm231 = vcmask 908288
    %v232 = vsel %vm231, %v222, %v224
    %v233 = vsel %vm231, %v224, %v226
    %v234 = vsel %vm231, %v226, %v228
    %v235 = vsel %vm231, %v228, %v230
    %v242 = vmul.f32 %v194, %v222
    %v243 = vmul.f32 %v195, %v232
    %v244 = vmul.f32 %v196, %v233
    %v245 = vmul.f32 %v197, %v234
    %v246 = vmul.f32 %v198, %v235
    %v247 = vmul.f32 %v199, %v230
    %v249 = vlaneseq
    %v250 = vshrl.u32 %v249, 7
    %v251 = vsub.s32 0, %v250
    %v252 = vrot.slane %v69, %v251
    %v253 = vlaneseq
    %v254 = vshrl.u32 %v253, 7
    %v255 = vsub.s32 1, %v254
    %v256 = vrot.slane %v69, %v255
    %v257 = vlaneseq
    %v258 = vshrl.u32 %v257, 7
    %v259 = vsub.s32 2, %v258
    %v260 = vrot.slane %v69, %v259
    %v261 = vlaneseq
    %v262 = vshrl.u32 %v261, 7
    %v263 = vsub.s32 3, %v262
    %v264 = vrot.slane %v69, %v263
    %v265 = vlaneseq
    %v266 = vshrl.u32 %v265, 7
    %v267 = vsub.s32 4, %v266
    %v268 = vrot.slane %v69, %v267
    %269 = vrot.lane.b32.xlu0 %v252, 113
    %v270 = vpop.permute.xlu0 %269
    %271 = vrot.lane.b32.xlu0 %v256, 113
    %v272 = vpop.permute.xlu0 %271
    %273 = vrot.lane.b32.xlu0 %v260, 113
    %v274 = vpop.permute.xlu0 %273
    %275 = vrot.lane.b32.xlu0 %v264, 113
    %v276 = vpop.permute.xlu0 %275
    %277 = vrot.lane.b32.xlu0 %v268, 113
    %v278 = vpop.permute.xlu0 %277
    %vm279 = vcmask 924672
    %v280 = vsel %vm279, %v270, %v272
    %v281 = vsel %vm279, %v272, %v274
    %v282 = vsel %vm279, %v274, %v276
    %v283 = vsel %vm279, %v276, %v278
    %v290 = vmul.f32 %v194, %v270
    %v291 = vmul.f32 %v195, %v280
    %v292 = vmul.f32 %v196, %v281
    %v293 = vmul.f32 %v197, %v282
    %v294 = vmul.f32 %v198, %v283
    %v295 = vmul.f32 %v199, %v278
    %302 = vrot.lane.b32.xlu0 %v194, 127
    %v303 = vpop.permute.xlu0 %302
    %304 = vrot.lane.b32.xlu0 %v195, 127
    %v305 = vpop.permute.xlu0 %304
    %306 = vrot.lane.b32.xlu0 %v196, 127
    %v307 = vpop.permute.xlu0 %306
    %308 = vrot.lane.b32.xlu0 %v197, 127
    %v309 = vpop.permute.xlu0 %308
    %310 = vrot.lane.b32.xlu0 %v198, 127
    %v311 = vpop.permute.xlu0 %310
    %312 = vrot.lane.b32.xlu0 %v199, 127
    %v313 = vpop.permute.xlu0 %312
    %vm314 = vcmask 1039360
    %v315 = vsel %vm314, %v303, %v305
    %v316 = vsel %vm314, %v305, %v307
    %v317 = vsel %vm314, %v307, %v309
    %v318 = vsel %vm314, %v309, %v311
    %v319 = vsel %vm314, %v311, %v313
    %326 = vrot.lane.b32.xlu0 %v290, 126
    %v327 = vpop.permute.xlu0 %326
    %328 = vrot.lane.b32.xlu0 %v291, 126
    %v329 = vpop.permute.xlu0 %328
    %330 = vrot.lane.b32.xlu0 %v292, 126
    %v331 = vpop.permute.xlu0 %330
    %332 = vrot.lane.b32.xlu0 %v293, 126
    %v333 = vpop.permute.xlu0 %332
    %334 = vrot.lane.b32.xlu0 %v294, 126
    %v335 = vpop.permute.xlu0 %334
    %336 = vrot.lane.b32.xlu0 %v295, 126
    %v337 = vpop.permute.xlu0 %336
    %vm338 = vcmask 1031168
    %v339 = vsel %vm338, %v327, %v329
    %v340 = vsel %vm338, %v329, %v331
    %v341 = vsel %vm338, %v331, %v333
    %v342 = vsel %vm338, %v333, %v335
    %v343 = vsel %vm338, %v335, %v337
    %v344 = vld [vmem:[%s4] sm:$0xf]
    %345 = vrot.lane.b32.xlu0 %v204, 127
    %v346 = vpop.permute.xlu0 %345
    %347 = vrot.lane.b32.xlu0 %v208, 127
    %v348 = vpop.permute.xlu0 %347
    %349 = vrot.lane.b32.xlu0 %v212, 127
    %v350 = vpop.permute.xlu0 %349
    %351 = vrot.lane.b32.xlu0 %v216, 127
    %v352 = vpop.permute.xlu0 %351
    %353 = vrot.lane.b32.xlu0 %v220, 127
    %v354 = vpop.permute.xlu0 %353
    %v355 = vsel %vm314, %v346, %v348
    %v356 = vsel %vm314, %v348, %v350
    %v357 = vsel %vm314, %v350, %v352
    %v358 = vsel %vm314, %v352, %v354
    %v365 = vmul.f32 %v194, %v346
    %v366 = vmul.f32 %v195, %v355
    %v367 = vmul.f32 %v196, %v356
    %v368 = vmul.f32 %v197, %v357
    %v369 = vmul.f32 %v198, %v358
    %v370 = vmul.f32 %v199, %v354
    %v371 = vld [vmem:[#allocation2 + $0x8] sm:$0xff]
    %v372 = vld [vmem:[#allocation2 + $0x10] sm:$0xff]
    %v373 = vld [vmem:[#allocation2 + $0x18] sm:$0xff]
    %v374 = vld [vmem:[#allocation2 + $0x20] sm:$0xff]
    %v375 = vld [vmem:[#allocation2 + $0x28] sm:$0xff]
    %v376 = vld [vmem:[#allocation2 + $0x30] sm:$0xff]
    %377 = vrot.lane.b32.xlu0 %v252, 1
    %v378 = vpop.permute.xlu0 %377
    %379 = vrot.lane.b32.xlu0 %v256, 1
    %v380 = vpop.permute.xlu0 %379
    %381 = vrot.lane.b32.xlu0 %v260, 1
    %v382 = vpop.permute.xlu0 %381
    %383 = vrot.lane.b32.xlu0 %v264, 1
    %v384 = vpop.permute.xlu0 %383
    %385 = vrot.lane.b32.xlu0 %v268, 1
    %v386 = vpop.permute.xlu0 %385
    %vm387 = vcmask 7168
    %v388 = vsel %vm387, %v378, %v380
    %v389 = vsel %vm387, %v380, %v382
    %v390 = vsel %vm387, %v382, %v384
    %v391 = vsel %vm387, %v384, %v386
    %v398 = vmul.f32 %v371, %v378
    %v399 = vmul.f32 %v372, %v388
    %v400 = vmul.f32 %v373, %v389
    %v401 = vmul.f32 %v374, %v390
    %v402 = vmul.f32 %v375, %v391
    %v403 = vmul.f32 %v376, %v386
    %410 = vrot.lane.b32.xlu0 %v398, 126
    %v411 = vpop.permute.xlu0 %410
    %412 = vrot.lane.b32.xlu0 %v399, 126
    %v413 = vpop.permute.xlu0 %412
    %414 = vrot.lane.b32.xlu0 %v400, 126
    %v415 = vpop.permute.xlu0 %414
    %416 = vrot.lane.b32.xlu0 %v401, 126
    %v417 = vpop.permute.xlu0 %416
    %418 = vrot.lane.b32.xlu0 %v402, 126
    %v419 = vpop.permute.xlu0 %418
    %420 = vrot.lane.b32.xlu0 %v403, 126
    %v421 = vpop.permute.xlu0 %420
    %v422 = vsel %vm338, %v411, %v413
    %v423 = vsel %vm338, %v413, %v415
    %v424 = vsel %vm338, %v415, %v417
    %v425 = vsel %vm338, %v417, %v419
    %v426 = vsel %vm338, %v419, %v421
    %428 = vrot.lane.b32.xlu0 %v344, 104
    %v429 = vpop.permute.xlu0 %428
    %436 = vrot.lane.b32.xlu0 %v365, 1
    %v437 = vpop.permute.xlu0 %436
    %438 = vrot.lane.b32.xlu0 %v366, 1
    %v439 = vpop.permute.xlu0 %438
    %440 = vrot.lane.b32.xlu0 %v367, 1
    %v441 = vpop.permute.xlu0 %440
    %442 = vrot.lane.b32.xlu0 %v368, 1
    %v443 = vpop.permute.xlu0 %442
    %444 = vrot.lane.b32.xlu0 %v369, 1
    %v445 = vpop.permute.xlu0 %444
    %446 = vrot.lane.b32.xlu0 %v370, 1
    %v447 = vpop.permute.xlu0 %446
    %448 = vrot.lane.b32.xlu0 %v305, 1
    %v449 = vpop.permute.xlu0 %448
    %450 = vrot.lane.b32.xlu0 %v316, 1
    %v451 = vpop.permute.xlu0 %450
    %452 = vrot.lane.b32.xlu0 %v317, 1
    %v453 = vpop.permute.xlu0 %452
    %454 = vrot.lane.b32.xlu0 %v318, 1
    %v455 = vpop.permute.xlu0 %454
    %456 = vrot.lane.b32.xlu0 %v319, 1
    %v457 = vpop.permute.xlu0 %456
    %458 = vrot.lane.b32.xlu0 %v313, 1
    %v459 = vpop.permute.xlu0 %458
    %460 = vrot.lane.b32.xlu0 %v411, 1
    %v461 = vpop.permute.xlu0 %460
    %462 = vrot.lane.b32.xlu0 %v422, 1
    %v463 = vpop.permute.xlu0 %462
    %464 = vrot.lane.b32.xlu0 %v423, 1
    %v465 = vpop.permute.xlu0 %464
    %466 = vrot.lane.b32.xlu0 %v424, 1
    %v467 = vpop.permute.xlu0 %466
    %468 = vrot.lane.b32.xlu0 %v425, 1
    %v469 = vpop.permute.xlu0 %468
    %470 = vrot.lane.b32.xlu0 %v426, 1
    %v471 = vpop.permute.xlu0 %470
    %v472 = vsel %vm387, %v437, %v439
    %v473 = vsel %vm387, %v439, %v441
    %v474 = vsel %vm387, %v441, %v443
    %v475 = vsel %vm387, %v443, %v445
    %v476 = vsel %vm387, %v445, %v447
    %v477 = vsel %vm387, %v449, %v451
    %v478 = vsel %vm387, %v451, %v453
    %v479 = vsel %vm387, %v453, %v455
    %v480 = vsel %vm387, %v455, %v457
    %v481 = vsel %vm387, %v457, %v459
    %v482 = vsel %vm387, %v461, %v463
    %v483 = vsel %vm387, %v463, %v465
    %v484 = vsel %vm387, %v465, %v467
    %v485 = vsel %vm387, %v467, %v469
    %v486 = vsel %vm387, %v469, %v471
    %vm502 = vcmask 195584
    %v503 = vsel %vm502, %v429, 0
    %505 = vmatprep.subr.mxu0 0.0
    %506 = vmatpush1.msra.mxu0 0.0
    %507 = vmatprep.subr.mxu0 0.0
    %508 = vmatpush1.msra.mxu0 0.0
    %509 = vmatprep.subr.mxu0 0.0
    %510 = vmatpush1.msra.mxu0 0.0
    %511 = vmatprep.subr.mxu0 0.0
    %512 = vmatpush1.msra.mxu0 0.0
    %513 = vmatprep.subr.mxu0 0.0
    %514 = vmatpush1.msra.mxu0 0.0
    %515 = vmatprep.subr.mxu0 0.0
    %516 = vmatpush1.msra.mxu0 0.0
    %517 = vmatprep.subr.mxu0 0.0
    %518 = vmatpush1.msra.mxu0 0.0
    %519 = vmatprep.subr.mxu0 0.0
    %520 = vmatpush1.msra.mxu0 0.0
    %521 = vmatprep.subr.mxu0 0.0
    %522 = vmatpush1.msra.mxu0 0.0
    %523 = vmatprep.subr.mxu0 0.0
    %524 = vmatpush1.msra.mxu0 0.0
    %525 = vmatprep.subr.mxu0 0.0
    %526 = vmatpush1.msra.mxu0 0.0
    %527 = vmatprep.subr.mxu0 0.0
    %528 = vmatpush1.msra.mxu0 0.0
    %529 = vmatprep.subr.mxu0 0.0
    %530 = vmatpush1.msra.mxu0 0.0
    %531 = vmatprep.subr.mxu0 %v483
    %532 = vmatpush1.msra.mxu0 %v482
    %533 = vmatprep.subr.mxu0 %v478
    %534 = vmatpush1.msra.mxu0 %v477
    %535 = vmatprep.subr.mxu0 %v473
    %536 = vmatpush1.msra.mxu0 %v472
    %537 = vmatprep.subr.mxu0 0.0
    %538 = vmatpush2.msra.mxu0 0.0
    %539 = vmatprep.subr.mxu0 0.0
    %540 = vmatpush2.msra.mxu0 0.0
    %541 = vmatprep.subr.mxu0 0.0
    %542 = vmatpush2.msra.mxu0 0.0
    %543 = vmatprep.subr.mxu0 0.0
    %544 = vmatpush2.msra.mxu0 0.0
    %545 = vmatprep.subr.mxu0 0.0
    %546 = vmatpush2.msra.mxu0 0.0
    %547 = vmatprep.subr.mxu0 0.0
    %548 = vmatpush2.msra.mxu0 0.0
    %549 = vmatprep.subr.mxu0 0.0
    %550 = vmatpush2.msra.mxu0 0.0
    %551 = vmatprep.subr.mxu0 0.0
    %552 = vmatpush2.msra.mxu0 0.0
    %553 = vmatprep.subr.mxu0 0.0
    %554 = vmatpush2.msra.mxu0 0.0
    %555 = vmatprep.subr.mxu0 0.0
    %556 = vmatpush2.msra.mxu0 0.0
    %557 = vmatprep.subr.mxu0 0.0
    %558 = vmatpush2.msra.mxu0 0.0
    %559 = vmatprep.subr.mxu0 0.0
    %560 = vmatpush2.msra.mxu0 0.0
    %561 = vmatprep.subr.mxu0 0.0
    %562 = vmatpush2.msra.mxu0 0.0
    %563 = vmatprep.subr.mxu0 0.0
    %564 = vmatpush2.msra.mxu0 0.0
    %565 = vmatprep.subr.mxu0 0.0
    %566 = vmatpush2.msra.mxu0 0.0
    %567 = vmatprep.subr.mxu0 0.0
    %568 = vmatpush2.msra.mxu0 0.0
    %569 = vmatprep.mubr.f32.mxu0 0.0
    %570 = vmatmul.mubr.f32.gmra.mxu0 %v503
    %v571 = vpop.f32.mrf.mxu0
    %v572 = vadd.f32 0.0, %v571
    %v573 = vpop.f32.mrf.mxu0
    %v574 = vadd.f32 0.0, %v573
    %575 = vdwg.mxu0
    %576 = vmatprep.subr.mxu0 0.0
    %577 = vmatpush1.msra.mxu0 0.0
    %578 = vmatprep.subr.mxu0 0.0
    %579 = vmatpush1.msra.mxu0 0.0
    %580 = vmatprep.subr.mxu0 0.0
    %581 = vmatpush1.msra.mxu0 0.0
    %582 = vmatprep.subr.mxu0 0.0
    %583 = vmatpush1.msra.mxu0 0.0
    %584 = vmatprep.subr.mxu0 0.0
    %585 = vmatpush1.msra.mxu0 0.0
    %586 = vmatprep.subr.mxu0 0.0
    %587 = vmatpush1.msra.mxu0 0.0
    %588 = vmatprep.subr.mxu0 0.0
    %589 = vmatpush1.msra.mxu0 0.0
    %590 = vmatprep.subr.mxu0 0.0
    %591 = vmatpush1.msra.mxu0 0.0
    %592 = vmatprep.subr.mxu0 0.0
    %593 = vmatpush1.msra.mxu0 0.0
    %594 = vmatprep.subr.mxu0 0.0
    %595 = vmatpush1.msra.mxu0 0.0
    %596 = vmatprep.subr.mxu0 0.0
    %597 = vmatpush1.msra.mxu0 0.0
    %598 = vmatprep.subr.mxu0 0.0
    %599 = vmatpush1.msra.mxu0 0.0
    %600 = vmatprep.subr.mxu0 0.0
    %601 = vmatpush1.msra.mxu0 0.0
    %602 = vmatprep.subr.mxu0 %v485
    %603 = vmatpush1.msra.mxu0 %v484
    %604 = vmatprep.subr.mxu0 %v480
    %605 = vmatpush1.msra.mxu0 %v479
    %606 = vmatprep.subr.mxu0 %v475
    %607 = vmatpush1.msra.mxu0 %v474
    %608 = vmatprep.subr.mxu0 0.0
    %609 = vmatpush2.msra.mxu0 0.0
    %610 = vmatprep.subr.mxu0 0.0
    %611 = vmatpush2.msra.mxu0 0.0
    %612 = vmatprep.subr.mxu0 0.0
    %613 = vmatpush2.msra.mxu0 0.0
    %614 = vmatprep.subr.mxu0 0.0
    %615 = vmatpush2.msra.mxu0 0.0
    %616 = vmatprep.subr.mxu0 0.0
    %617 = vmatpush2.msra.mxu0 0.0
    %618 = vmatprep.subr.mxu0 0.0
    %619 = vmatpush2.msra.mxu0 0.0
    %620 = vmatprep.subr.mxu0 0.0
    %621 = vmatpush2.msra.mxu0 0.0
    %622 = vmatprep.subr.mxu0 0.0
    %623 = vmatpush2.msra.mxu0 0.0
    %624 = vmatprep.subr.mxu0 0.0
    %625 = vmatpush2.msra.mxu0 0.0
    %626 = vmatprep.subr.mxu0 0.0
    %627 = vmatpush2.msra.mxu0 0.0
    %628 = vmatprep.subr.mxu0 0.0
    %629 = vmatpush2.msra.mxu0 0.0
    %630 = vmatprep.subr.mxu0 0.0
    %631 = vmatpush2.msra.mxu0 0.0
    %632 = vmatprep.subr.mxu0 0.0
    %633 = vmatpush2.msra.mxu0 0.0
    %634 = vmatprep.subr.mxu0 0.0
    %635 = vmatpush2.msra.mxu0 0.0
    %636 = vmatprep.subr.mxu0 0.0
    %637 = vmatpush2.msra.mxu0 0.0
    %638 = vmatprep.subr.mxu0 0.0
    %639 = vmatpush2.msra.mxu0 0.0
    %640 = vmatprep.mubr.f32.mxu0 0.0
    %641 = vmatmul.mubr.f32.gmra.mxu0 %v503
    %v642 = vpop.f32.mrf.mxu0
    %v643 = vadd.f32 0.0, %v642
    %v644 = vpop.f32.mrf.mxu0
    %v645 = vadd.f32 0.0, %v644
    %646 = vdwg.mxu0
    %647 = vmatprep.subr.mxu0 0.0
    %648 = vmatpush1.msra.mxu0 0.0
    %649 = vmatprep.subr.mxu0 0.0
    %650 = vmatpush1.msra.mxu0 0.0
    %651 = vmatprep.subr.mxu0 0.0
    %652 = vmatpush1.msra.mxu0 0.0
    %653 = vmatprep.subr.mxu0 0.0
    %654 = vmatpush1.msra.mxu0 0.0
    %655 = vmatprep.subr.mxu0 0.0
    %656 = vmatpush1.msra.mxu0 0.0
    %657 = vmatprep.subr.mxu0 0.0
    %658 = vmatpush1.msra.mxu0 0.0
    %659 = vmatprep.subr.mxu0 0.0
    %660 = vmatpush1.msra.mxu0 0.0
    %661 = vmatprep.subr.mxu0 0.0
    %662 = vmatpush1.msra.mxu0 0.0
    %663 = vmatprep.subr.mxu0 0.0
    %664 = vmatpush1.msra.mxu0 0.0
    %665 = vmatprep.subr.mxu0 0.0
    %666 = vmatpush1.msra.mxu0 0.0
    %667 = vmatprep.subr.mxu0 0.0
    %668 = vmatpush1.msra.mxu0 0.0
    %669 = vmatprep.subr.mxu0 0.0
    %670 = vmatpush1.msra.mxu0 0.0
    %671 = vmatprep.subr.mxu0 0.0
    %672 = vmatpush1.msra.mxu0 0.0
    %673 = vmatprep.subr.mxu0 0.0
    %674 = vmatpush1.msra.mxu0 %v486
    %675 = vmatprep.subr.mxu0 0.0
    %676 = vmatpush1.msra.mxu0 %v481
    %677 = vmatprep.subr.mxu0 0.0
    %678 = vmatpush1.msra.mxu0 %v476
    %679 = vmatprep.subr.mxu0 0.0
    %680 = vmatpush2.msra.mxu0 0.0
    %681 = vmatprep.subr.mxu0 0.0
    %682 = vmatpush2.msra.mxu0 0.0
    %683 = vmatprep.subr.mxu0 0.0
    %684 = vmatpush2.msra.mxu0 0.0
    %685 = vmatprep.subr.mxu0 0.0
    %686 = vmatpush2.msra.mxu0 0.0
    %687 = vmatprep.subr.mxu0 0.0
    %688 = vmatpush2.msra.mxu0 0.0
    %689 = vmatprep.subr.mxu0 0.0
    %690 = vmatpush2.msra.mxu0 0.0
    %691 = vmatprep.subr.mxu0 0.0
    %692 = vmatpush2.msra.mxu0 0.0
    %693 = vmatprep.subr.mxu0 0.0
    %694 = vmatpush2.msra.mxu0 0.0
    %695 = vmatprep.subr.mxu0 0.0
    %696 = vmatpush2.msra.mxu0 0.0
    %697 = vmatprep.subr.mxu0 0.0
    %698 = vmatpush2.msra.mxu0 0.0
    %699 = vmatprep.subr.mxu0 0.0
    %700 = vmatpush2.msra.mxu0 0.0
    %701 = vmatprep.subr.mxu0 0.0
    %702 = vmatpush2.msra.mxu0 0.0
    %703 = vmatprep.subr.mxu0 0.0
    %704 = vmatpush2.msra.mxu0 0.0
    %705 = vmatprep.subr.mxu0 0.0
    %706 = vmatpush2.msra.mxu0 0.0
    %707 = vmatprep.subr.mxu0 0.0
    %708 = vmatpush2.msra.mxu0 0.0
    %709 = vmatprep.subr.mxu0 0.0
    %710 = vmatpush2.msra.mxu0 0.0
    %711 = vmatprep.mubr.f32.mxu0 0.0
    %712 = vmatmul.mubr.f32.gmra.mxu0 %v503
    %v713 = vpop.f32.mrf.mxu0
    %v714 = vadd.f32 0.0, %v713
    %v715 = vpop.f32.mrf.mxu0
    %716 = vdwg.mxu0
    %723 = vrot.lane.b32.xlu0 %v242, 17
    %v724 = vpop.permute.xlu0 %723
    %725 = vrot.lane.b32.xlu0 %v243, 17
    %v726 = vpop.permute.xlu0 %725
    %727 = vrot.lane.b32.xlu0 %v244, 17
    %v728 = vpop.permute.xlu0 %727
    %729 = vrot.lane.b32.xlu0 %v245, 17
    %v730 = vpop.permute.xlu0 %729
    %731 = vrot.lane.b32.xlu0 %v246, 17
    %v732 = vpop.permute.xlu0 %731
    %733 = vrot.lane.b32.xlu0 %v247, 17
    %v734 = vpop.permute.xlu0 %733
    %735 = vrot.lane.b32.xlu0 %v315, 17
    %v736 = vpop.permute.xlu0 %735
    %737 = vrot.lane.b32.xlu0 %v316, 17
    %v738 = vpop.permute.xlu0 %737
    %739 = vrot.lane.b32.xlu0 %v317, 17
    %v740 = vpop.permute.xlu0 %739
    %741 = vrot.lane.b32.xlu0 %v318, 17
    %v742 = vpop.permute.xlu0 %741
    %743 = vrot.lane.b32.xlu0 %v319, 17
    %v744 = vpop.permute.xlu0 %743
    %745 = vrot.lane.b32.xlu0 %v313, 17
    %v746 = vpop.permute.xlu0 %745
    %747 = vrot.lane.b32.xlu0 %v339, 17
    %v748 = vpop.permute.xlu0 %747
    %749 = vrot.lane.b32.xlu0 %v340, 17
    %v750 = vpop.permute.xlu0 %749
    %751 = vrot.lane.b32.xlu0 %v341, 17
    %v752 = vpop.permute.xlu0 %751
    %753 = vrot.lane.b32.xlu0 %v342, 17
    %v754 = vpop.permute.xlu0 %753
    %755 = vrot.lane.b32.xlu0 %v343, 17
    %v756 = vpop.permute.xlu0 %755
    %757 = vrot.lane.b32.xlu0 %v337, 17
    %v758 = vpop.permute.xlu0 %757
    %vm759 = vcmask 138240
    %v760 = vsel %vm759, %v724, %v726
    %v761 = vsel %vm759, %v726, %v728
    %v762 = vsel %vm759, %v728, %v730
    %v763 = vsel %vm759, %v730, %v732
    %v764 = vsel %vm759, %v732, %v734
    %v765 = vsel %vm759, %v736, %v738
    %v766 = vsel %vm759, %v738, %v740
    %v767 = vsel %vm759, %v740, %v742
    %v768 = vsel %vm759, %v742, %v744
    %v769 = vsel %vm759, %v744, %v746
    %v770 = vsel %vm759, %v748, %v750
    %v771 = vsel %vm759, %v750, %v752
    %v772 = vsel %vm759, %v752, %v754
    %v773 = vsel %vm759, %v754, %v756
    %v774 = vsel %vm759, %v756, %v758
    %v790 = vsel %vm502, %v344, 0
    %792 = vmatprep.subr.mxu0 0.0
    %793 = vmatpush1.msra.mxu0 0.0
    %794 = vmatprep.subr.mxu0 0.0
    %795 = vmatpush1.msra.mxu0 0.0
    %796 = vmatprep.subr.mxu0 0.0
    %797 = vmatpush1.msra.mxu0 0.0
    %798 = vmatprep.subr.mxu0 0.0
    %799 = vmatpush1.msra.mxu0 0.0
    %800 = vmatprep.subr.mxu0 0.0
    %801 = vmatpush1.msra.mxu0 0.0
    %802 = vmatprep.subr.mxu0 0.0
    %803 = vmatpush1.msra.mxu0 0.0
    %804 = vmatprep.subr.mxu0 0.0
    %805 = vmatpush1.msra.mxu0 0.0
    %806 = vmatprep.subr.mxu0 0.0
    %807 = vmatpush1.msra.mxu0 0.0
    %808 = vmatprep.subr.mxu0 0.0
    %809 = vmatpush1.msra.mxu0 0.0
    %810 = vmatprep.subr.mxu0 0.0
    %811 = vmatpush1.msra.mxu0 0.0
    %812 = vmatprep.subr.mxu0 0.0
    %813 = vmatpush1.msra.mxu0 0.0
    %814 = vmatprep.subr.mxu0 0.0
    %815 = vmatpush1.msra.mxu0 0.0
    %816 = vmatprep.subr.mxu0 0.0
    %817 = vmatpush1.msra.mxu0 0.0
    %818 = vmatprep.subr.mxu0 %v771
    %819 = vmatpush1.msra.mxu0 %v770
    %820 = vmatprep.subr.mxu0 %v766
    %821 = vmatpush1.msra.mxu0 %v765
    %822 = vmatprep.subr.mxu0 %v761
    %823 = vmatpush1.msra.mxu0 %v760
    %824 = vmatprep.subr.mxu0 0.0
    %825 = vmatpush2.msra.mxu0 0.0
    %826 = vmatprep.subr.mxu0 0.0
    %827 = vmatpush2.msra.mxu0 0.0
    %828 = vmatprep.subr.mxu0 0.0
    %829 = vmatpush2.msra.mxu0 0.0
    %830 = vmatprep.subr.mxu0 0.0
    %831 = vmatpush2.msra.mxu0 0.0
    %832 = vmatprep.subr.mxu0 0.0
    %833 = vmatpush2.msra.mxu0 0.0
    %834 = vmatprep.subr.mxu0 0.0
    %835 = vmatpush2.msra.mxu0 0.0
    %836 = vmatprep.subr.mxu0 0.0
    %837 = vmatpush2.msra.mxu0 0.0
    %838 = vmatprep.subr.mxu0 0.0
    %839 = vmatpush2.msra.mxu0 0.0
    %840 = vmatprep.subr.mxu0 0.0
    %841 = vmatpush2.msra.mxu0 0.0
    %842 = vmatprep.subr.mxu0 0.0
    %843 = vmatpush2.msra.mxu0 0.0
    %844 = vmatprep.subr.mxu0 0.0
    %845 = vmatpush2.msra.mxu0 0.0
    %846 = vmatprep.subr.mxu0 0.0
    %847 = vmatpush2.msra.mxu0 0.0
    %848 = vmatprep.subr.mxu0 0.0
    %849 = vmatpush2.msra.mxu0 0.0
    %850 = vmatprep.subr.mxu0 0.0
    %851 = vmatpush2.msra.mxu0 0.0
    %852 = vmatprep.subr.mxu0 0.0
    %853 = vmatpush2.msra.mxu0 0.0
    %854 = vmatprep.subr.mxu0 0.0
    %855 = vmatpush2.msra.mxu0 0.0
    %856 = vmatprep.mubr.f32.mxu0 0.0
    %857 = vmatmul.mubr.f32.gmra.mxu0 %v790
    %v858 = vpop.f32.mrf.mxu0
    %v859 = vadd.f32 %v572, %v858
    %v860 = vpop.f32.mrf.mxu0
    %v861 = vadd.f32 %v574, %v860
    %862 = vdwg.mxu0
    %863 = vmatprep.subr.mxu0 0.0
    %864 = vmatpush1.msra.mxu0 0.0
    %865 = vmatprep.subr.mxu0 0.0
    %866 = vmatpush1.msra.mxu0 0.0
    %867 = vmatprep.subr.mxu0 0.0
    %868 = vmatpush1.msra.mxu0 0.0
    %869 = vmatprep.subr.mxu0 0.0
    %870 = vmatpush1.msra.mxu0 0.0
    %871 = vmatprep.subr.mxu0 0.0
    %872 = vmatpush1.msra.mxu0 0.0
    %873 = vmatprep.subr.mxu0 0.0
    %874 = vmatpush1.msra.mxu0 0.0
    %875 = vmatprep.subr.mxu0 0.0
    %876 = vmatpush1.msra.mxu0 0.0
    %877 = vmatprep.subr.mxu0 0.0
    %878 = vmatpush1.msra.mxu0 0.0
    %879 = vmatprep.subr.mxu0 0.0
    %880 = vmatpush1.msra.mxu0 0.0
    %881 = vmatprep.subr.mxu0 0.0
    %882 = vmatpush1.msra.mxu0 0.0
    %883 = vmatprep.subr.mxu0 0.0
    %884 = vmatpush1.msra.mxu0 0.0
    %885 = vmatprep.subr.mxu0 0.0
    %886 = vmatpush1.msra.mxu0 0.0
    %887 = vmatprep.subr.mxu0 0.0
    %888 = vmatpush1.msra.mxu0 0.0
    %889 = vmatprep.subr.mxu0 %v773
    %890 = vmatpush1.msra.mxu0 %v772
    %891 = vmatprep.subr.mxu0 %v768
    %892 = vmatpush1.msra.mxu0 %v767
    %893 = vmatprep.subr.mxu0 %v763
    %894 = vmatpush1.msra.mxu0 %v762
    %895 = vmatprep.subr.mxu0 0.0
    %896 = vmatpush2.msra.mxu0 0.0
    %897 = vmatprep.subr.mxu0 0.0
    %898 = vmatpush2.msra.mxu0 0.0
    %899 = vmatprep.subr.mxu0 0.0
    %900 = vmatpush2.msra.mxu0 0.0
    %901 = vmatprep.subr.mxu0 0.0
    %902 = vmatpush2.msra.mxu0 0.0
    %903 = vmatprep.subr.mxu0 0.0
    %904 = vmatpush2.msra.mxu0 0.0
    %905 = vmatprep.subr.mxu0 0.0
    %906 = vmatpush2.msra.mxu0 0.0
    %907 = vmatprep.subr.mxu0 0.0
    %908 = vmatpush2.msra.mxu0 0.0
    %909 = vmatprep.subr.mxu0 0.0
    %910 = vmatpush2.msra.mxu0 0.0
    %911 = vmatprep.subr.mxu0 0.0
    %912 = vmatpush2.msra.mxu0 0.0
    %913 = vmatprep.subr.mxu0 0.0
    %914 = vmatpush2.msra.mxu0 0.0
    %915 = vmatprep.subr.mxu0 0.0
    %916 = vmatpush2.msra.mxu0 0.0
    %917 = vmatprep.subr.mxu0 0.0
    %918 = vmatpush2.msra.mxu0 0.0
    %919 = vmatprep.subr.mxu0 0.0
    %920 = vmatpush2.msra.mxu0 0.0
    %921 = vmatprep.subr.mxu0 0.0
    %922 = vmatpush2.msra.mxu0 0.0
    %923 = vmatprep.subr.mxu0 0.0
    %924 = vmatpush2.msra.mxu0 0.0
    %925 = vmatprep.subr.mxu0 0.0
    %926 = vmatpush2.msra.mxu0 0.0
    %927 = vmatprep.mubr.f32.mxu0 0.0
    %928 = vmatmul.mubr.f32.gmra.mxu0 %v790
    %v929 = vpop.f32.mrf.mxu0
    %v930 = vadd.f32 %v643, %v929
    %v931 = vpop.f32.mrf.mxu0
    %v932 = vadd.f32 %v645, %v931
    %933 = vdwg.mxu0
    %934 = vmatprep.subr.mxu0 0.0
    %935 = vmatpush1.msra.mxu0 0.0
    %936 = vmatprep.subr.mxu0 0.0
    %937 = vmatpush1.msra.mxu0 0.0
    %938 = vmatprep.subr.mxu0 0.0
    %939 = vmatpush1.msra.mxu0 0.0
    %940 = vmatprep.subr.mxu0 0.0
    %941 = vmatpush1.msra.mxu0 0.0
    %942 = vmatprep.subr.mxu0 0.0
    %943 = vmatpush1.msra.mxu0 0.0
    %944 = vmatprep.subr.mxu0 0.0
    %945 = vmatpush1.msra.mxu0 0.0
    %946 = vmatprep.subr.mxu0 0.0
    %947 = vmatpush1.msra.mxu0 0.0
    %948 = vmatprep.subr.mxu0 0.0
    %949 = vmatpush1.msra.mxu0 0.0
    %950 = vmatprep.subr.mxu0 0.0
    %951 = vmatpush1.msra.mxu0 0.0
    %952 = vmatprep.subr.mxu0 0.0
    %953 = vmatpush1.msra.mxu0 0.0
    %954 = vmatprep.subr.mxu0 0.0
    %955 = vmatpush1.msra.mxu0 0.0
    %956 = vmatprep.subr.mxu0 0.0
    %957 = vmatpush1.msra.mxu0 0.0
    %958 = vmatprep.subr.mxu0 0.0
    %959 = vmatpush1.msra.mxu0 0.0
    %960 = vmatprep.subr.mxu0 0.0
    %961 = vmatpush1.msra.mxu0 %v774
    %962 = vmatprep.subr.mxu0 0.0
    %963 = vmatpush1.msra.mxu0 %v769
    %964 = vmatprep.subr.mxu0 0.0
    %965 = vmatpush1.msra.mxu0 %v764
    %966 = vmatprep.subr.mxu0 0.0
    %967 = vmatpush2.msra.mxu0 0.0
    %968 = vmatprep.subr.mxu0 0.0
    %969 = vmatpush2.msra.mxu0 0.0
    %970 = vmatprep.subr.mxu0 0.0
    %971 = vmatpush2.msra.mxu0 0.0
    %972 = vmatprep.subr.mxu0 0.0
    %973 = vmatpush2.msra.mxu0 0.0
    %974 = vmatprep.subr.mxu0 0.0
    %975 = vmatpush2.msra.mxu0 0.0
    %976 = vmatprep.subr.mxu0 0.0
    %977 = vmatpush2.msra.mxu0 0.0
    %978 = vmatprep.subr.mxu0 0.0
    %979 = vmatpush2.msra.mxu0 0.0
    %980 = vmatprep.subr.mxu0 0.0
    %981 = vmatpush2.msra.mxu0 0.0
    %982 = vmatprep.subr.mxu0 0.0
    %983 = vmatpush2.msra.mxu0 0.0
    %984 = vmatprep.subr.mxu0 0.0
    %985 = vmatpush2.msra.mxu0 0.0
    %986 = vmatprep.subr.mxu0 0.0
    %987 = vmatpush2.msra.mxu0 0.0
    %988 = vmatprep.subr.mxu0 0.0
    %989 = vmatpush2.msra.mxu0 0.0
    %990 = vmatprep.subr.mxu0 0.0
    %991 = vmatpush2.msra.mxu0 0.0
    %992 = vmatprep.subr.mxu0 0.0
    %993 = vmatpush2.msra.mxu0 0.0
    %994 = vmatprep.subr.mxu0 0.0
    %995 = vmatpush2.msra.mxu0 0.0
    %996 = vmatprep.subr.mxu0 0.0
    %997 = vmatpush2.msra.mxu0 0.0
    %998 = vmatprep.mubr.f32.mxu0 0.0
    %999 = vmatmul.mubr.f32.gmra.mxu0 %v790
    %v1000 = vpop.f32.mrf.mxu0
    %v1001 = vadd.f32 %v714, %v1000
    %v1002 = vpop.f32.mrf.mxu0
    %1003 = vdwg.mxu0
    %1004 = vrot.lane.b32.xlu0 %v204, 15
    %v1005 = vpop.permute.xlu0 %1004
    %1006 = vrot.lane.b32.xlu0 %v208, 15
    %v1007 = vpop.permute.xlu0 %1006
    %1008 = vrot.lane.b32.xlu0 %v212, 15
    %v1009 = vpop.permute.xlu0 %1008
    %1010 = vrot.lane.b32.xlu0 %v216, 15
    %v1011 = vpop.permute.xlu0 %1010
    %1012 = vrot.lane.b32.xlu0 %v220, 15
    %v1013 = vpop.permute.xlu0 %1012
    %vm1014 = vcmask 121856
    %v1015 = vsel %vm1014, %v1005, %v1007
    %v1016 = vsel %vm1014, %v1007, %v1009
    %v1017 = vsel %vm1014, %v1009, %v1011
    %v1018 = vsel %vm1014, %v1011, %v1013
    %v1025 = vmul.f32 %v371, %v1005
    %v1026 = vmul.f32 %v372, %v1015
    %v1027 = vmul.f32 %v373, %v1016
    %v1028 = vmul.f32 %v374, %v1017
    %v1029 = vmul.f32 %v375, %v1018
    %v1030 = vmul.f32 %v376, %v1013
    %1031 = vrot.lane.b32.xlu0 %v252, 17
    %v1032 = vpop.permute.xlu0 %1031
    %1033 = vrot.lane.b32.xlu0 %v256, 17
    %v1034 = vpop.permute.xlu0 %1033
    %1035 = vrot.lane.b32.xlu0 %v260, 17
    %v1036 = vpop.permute.xlu0 %1035
    %1037 = vrot.lane.b32.xlu0 %v264, 17
    %v1038 = vpop.permute.xlu0 %1037
    %1039 = vrot.lane.b32.xlu0 %v268, 17
    %v1040 = vpop.permute.xlu0 %1039
    %v1041 = vsel %vm759, %v1032, %v1034
    %v1042 = vsel %vm759, %v1034, %v1036
    %v1043 = vsel %vm759, %v1036, %v1038
    %v1044 = vsel %vm759, %v1038, %v1040
    %v1051 = vmul.f32 %v371, %v1032
    %v1052 = vmul.f32 %v372, %v1041
    %v1053 = vmul.f32 %v373, %v1042
    %v1054 = vmul.f32 %v374, %v1043
    %v1055 = vmul.f32 %v375, %v1044
    %v1056 = vmul.f32 %v376, %v1040
    %1063 = vrot.lane.b32.xlu0 %v371, 127
    %v1064 = vpop.permute.xlu0 %1063
    %1065 = vrot.lane.b32.xlu0 %v372, 127
    %v1066 = vpop.permute.xlu0 %1065
    %1067 = vrot.lane.b32.xlu0 %v373, 127
    %v1068 = vpop.permute.xlu0 %1067
    %1069 = vrot.lane.b32.xlu0 %v374, 127
    %v1070 = vpop.permute.xlu0 %1069
    %1071 = vrot.lane.b32.xlu0 %v375, 127
    %v1072 = vpop.permute.xlu0 %1071
    %1073 = vrot.lane.b32.xlu0 %v376, 127
    %v1074 = vpop.permute.xlu0 %1073
    %v1075 = vsel %vm314, %v1064, %v1066
    %v1076 = vsel %vm314, %v1066, %v1068
    %v1077 = vsel %vm314, %v1068, %v1070
    %v1078 = vsel %vm314, %v1070, %v1072
    %v1079 = vsel %vm314, %v1072, %v1074
    %1086 = vrot.lane.b32.xlu0 %v1051, 126
    %v1087 = vpop.permute.xlu0 %1086
    %1088 = vrot.lane.b32.xlu0 %v1052, 126
    %v1089 = vpop.permute.xlu0 %1088
    %1090 = vrot.lane.b32.xlu0 %v1053, 126
    %v1091 = vpop.permute.xlu0 %1090
    %1092 = vrot.lane.b32.xlu0 %v1054, 126
    %v1093 = vpop.permute.xlu0 %1092
    %1094 = vrot.lane.b32.xlu0 %v1055, 126
    %v1095 = vpop.permute.xlu0 %1094
    %1096 = vrot.lane.b32.xlu0 %v1056, 126
    %v1097 = vpop.permute.xlu0 %1096
    %v1098 = vsel %vm338, %v1087, %v1089
    %v1099 = vsel %vm338, %v1089, %v1091
    %v1100 = vsel %vm338, %v1091, %v1093
    %v1101 = vsel %vm338, %v1093, %v1095
    %v1102 = vsel %vm338, %v1095, %v1097
    %1103 = vrot.lane.b32.xlu0 %v344, 80
    %v1104 = vpop.permute.xlu0 %1103
    %1111 = vrot.lane.b32.xlu0 %v1025, 113
    %v1112 = vpop.permute.xlu0 %1111
    %1113 = vrot.lane.b32.xlu0 %v1026, 113
    %v1114 = vpop.permute.xlu0 %1113
    %1115 = vrot.lane.b32.xlu0 %v1027, 113
    %v1116 = vpop.permute.xlu0 %1115
    %1117 = vrot.lane.b32.xlu0 %v1028, 113
    %v1118 = vpop.permute.xlu0 %1117
    %1119 = vrot.lane.b32.xlu0 %v1029, 113
    %v1120 = vpop.permute.xlu0 %1119
    %1121 = vrot.lane.b32.xlu0 %v1030, 113
    %v1122 = vpop.permute.xlu0 %1121
    %1123 = vrot.lane.b32.xlu0 %v1075, 113
    %v1124 = vpop.permute.xlu0 %1123
    %1125 = vrot.lane.b32.xlu0 %v1076, 113
    %v1126 = vpop.permute.xlu0 %1125
    %1127 = vrot.lane.b32.xlu0 %v1077, 113
    %v1128 = vpop.permute.xlu0 %1127
    %1129 = vrot.lane.b32.xlu0 %v1078, 113
    %v1130 = vpop.permute.xlu0 %1129
    %1131 = vrot.lane.b32.xlu0 %v1079, 113
    %v1132 = vpop.permute.xlu0 %1131
    %1133 = vrot.lane.b32.xlu0 %v1074, 113
    %v1134 = vpop.permute.xlu0 %1133
    %1135 = vrot.lane.b32.xlu0 %v1098, 113
    %v1136 = vpop.permute.xlu0 %1135
    %1137 = vrot.lane.b32.xlu0 %v1099, 113
    %v1138 = vpop.permute.xlu0 %1137
    %1139 = vrot.lane.b32.xlu0 %v1100, 113
    %v1140 = vpop.permute.xlu0 %1139
    %1141 = vrot.lane.b32.xlu0 %v1101, 113
    %v1142 = vpop.permute.xlu0 %1141
    %1143 = vrot.lane.b32.xlu0 %v1102, 113
    %v1144 = vpop.permute.xlu0 %1143
    %1145 = vrot.lane.b32.xlu0 %v1097, 113
    %v1146 = vpop.permute.xlu0 %1145
    %v1147 = vsel %vm279, %v1112, %v1114
    %v1148 = vsel %vm279, %v1114, %v1116
    %v1149 = vsel %vm279, %v1116, %v1118
    %v1150 = vsel %vm279, %v1118, %v1120
    %v1151 = vsel %vm279, %v1120, %v1122
    %v1152 = vsel %vm279, %v1124, %v1126
    %v1153 = vsel %vm279, %v1126, %v1128
    %v1154 = vsel %vm279, %v1128, %v1130
    %v1155 = vsel %vm279, %v1130, %v1132
    %v1156 = vsel %vm279, %v1132, %v1134
    %v1157 = vsel %vm279, %v1136, %v1138
    %v1158 = vsel %vm279, %v1138, %v1140
    %v1159 = vsel %vm279, %v1140, %v1142
    %v1160 = vsel %vm279, %v1142, %v1144
    %v1161 = vsel %vm279, %v1144, %v1146
    %v1177 = vsel %vm502, %v1104, 0
    %1179 = vmatprep.subr.mxu0 0.0
    %1180 = vmatpush1.msra.mxu0 0.0
    %1181 = vmatprep.subr.mxu0 0.0
    %1182 = vmatpush1.msra.mxu0 0.0
    %1183 = vmatprep.subr.mxu0 0.0
    %1184 = vmatpush1.msra.mxu0 0.0
    %1185 = vmatprep.subr.mxu0 0.0
    %1186 = vmatpush1.msra.mxu0 0.0
    %1187 = vmatprep.subr.mxu0 0.0
    %1188 = vmatpush1.msra.mxu0 0.0
    %1189 = vmatprep.subr.mxu0 0.0
    %1190 = vmatpush1.msra.mxu0 0.0
    %1191 = vmatprep.subr.mxu0 0.0
    %1192 = vmatpush1.msra.mxu0 0.0
    %1193 = vmatprep.subr.mxu0 0.0
    %1194 = vmatpush1.msra.mxu0 0.0
    %1195 = vmatprep.subr.mxu0 0.0
    %1196 = vmatpush1.msra.mxu0 0.0
    %1197 = vmatprep.subr.mxu0 0.0
    %1198 = vmatpush1.msra.mxu0 0.0
    %1199 = vmatprep.subr.mxu0 0.0
    %1200 = vmatpush1.msra.mxu0 0.0
    %1201 = vmatprep.subr.mxu0 0.0
    %1202 = vmatpush1.msra.mxu0 0.0
    %1203 = vmatprep.subr.mxu0 0.0
    %1204 = vmatpush1.msra.mxu0 0.0
    %1205 = vmatprep.subr.mxu0 %v1158
    %1206 = vmatpush1.msra.mxu0 %v1157
    %1207 = vmatprep.subr.mxu0 %v1153
    %1208 = vmatpush1.msra.mxu0 %v1152
    %1209 = vmatprep.subr.mxu0 %v1148
    %1210 = vmatpush1.msra.mxu0 %v1147
    %1211 = vmatprep.subr.mxu0 0.0
    %1212 = vmatpush2.msra.mxu0 0.0
    %1213 = vmatprep.subr.mxu0 0.0
    %1214 = vmatpush2.msra.mxu0 0.0
    %1215 = vmatprep.subr.mxu0 0.0
    %1216 = vmatpush2.msra.mxu0 0.0
    %1217 = vmatprep.subr.mxu0 0.0
    %1218 = vmatpush2.msra.mxu0 0.0
    %1219 = vmatprep.subr.mxu0 0.0
    %1220 = vmatpush2.msra.mxu0 0.0
    %1221 = vmatprep.subr.mxu0 0.0
    %1222 = vmatpush2.msra.mxu0 0.0
    %1223 = vmatprep.subr.mxu0 0.0
    %1224 = vmatpush2.msra.mxu0 0.0
    %1225 = vmatprep.subr.mxu0 0.0
    %1226 = vmatpush2.msra.mxu0 0.0
    %1227 = vmatprep.subr.mxu0 0.0
    %1228 = vmatpush2.msra.mxu0 0.0
    %1229 = vmatprep.subr.mxu0 0.0
    %1230 = vmatpush2.msra.mxu0 0.0
    %1231 = vmatprep.subr.mxu0 0.0
    %1232 = vmatpush2.msra.mxu0 0.0
    %1233 = vmatprep.subr.mxu0 0.0
    %1234 = vmatpush2.msra.mxu0 0.0
    %1235 = vmatprep.subr.mxu0 0.0
    %1236 = vmatpush2.msra.mxu0 0.0
    %1237 = vmatprep.subr.mxu0 0.0
    %1238 = vmatpush2.msra.mxu0 0.0
    %1239 = vmatprep.subr.mxu0 0.0
    %1240 = vmatpush2.msra.mxu0 0.0
    %1241 = vmatprep.subr.mxu0 0.0
    %1242 = vmatpush2.msra.mxu0 0.0
    %1243 = vmatprep.mubr.f32.mxu0 0.0
    %1244 = vmatmul.mubr.f32.gmra.mxu0 %v1177
    %v1245 = vpop.f32.mrf.mxu0
    %v1246 = vadd.f32 0.0, %v1245
    %v1247 = vpop.f32.mrf.mxu0
    %v1248 = vadd.f32 0.0, %v1247
    %1249 = vdwg.mxu0
    %1250 = vmatprep.subr.mxu0 0.0
    %1251 = vmatpush1.msra.mxu0 0.0
    %1252 = vmatprep.subr.mxu0 0.0
    %1253 = vmatpush1.msra.mxu0 0.0
    %1254 = vmatprep.subr.mxu0 0.0
    %1255 = vmatpush1.msra.mxu0 0.0
    %1256 = vmatprep.subr.mxu0 0.0
    %1257 = vmatpush1.msra.mxu0 0.0
    %1258 = vmatprep.subr.mxu0 0.0
    %1259 = vmatpush1.msra.mxu0 0.0
    %1260 = vmatprep.subr.mxu0 0.0
    %1261 = vmatpush1.msra.mxu0 0.0
    %1262 = vmatprep.subr.mxu0 0.0
    %1263 = vmatpush1.msra.mxu0 0.0
    %1264 = vmatprep.subr.mxu0 0.0
    %1265 = vmatpush1.msra.mxu0 0.0
    %1266 = vmatprep.subr.mxu0 0.0
    %1267 = vmatpush1.msra.mxu0 0.0
    %1268 = vmatprep.subr.mxu0 0.0
    %1269 = vmatpush1.msra.mxu0 0.0
    %1270 = vmatprep.subr.mxu0 0.0
    %1271 = vmatpush1.msra.mxu0 0.0
    %1272 = vmatprep.subr.mxu0 0.0
    %1273 = vmatpush1.msra.mxu0 0.0
    %1274 = vmatprep.subr.mxu0 0.0
    %1275 = vmatpush1.msra.mxu0 0.0
    %1276 = vmatprep.subr.mxu0 %v1160
    %1277 = vmatpush1.msra.mxu0 %v1159
    %1278 = vmatprep.subr.mxu0 %v1155
    %1279 = vmatpush1.msra.mxu0 %v1154
    %1280 = vmatprep.subr.mxu0 %v1150
    %1281 = vmatpush1.msra.mxu0 %v1149
    %1282 = vmatprep.subr.mxu0 0.0
    %1283 = vmatpush2.msra.mxu0 0.0
    %1284 = vmatprep.subr.mxu0 0.0
    %1285 = vmatpush2.msra.mxu0 0.0
    %1286 = vmatprep.subr.mxu0 0.0
    %1287 = vmatpush2.msra.mxu0 0.0
    %1288 = vmatprep.subr.mxu0 0.0
    %1289 = vmatpush2.msra.mxu0 0.0
    %1290 = vmatprep.subr.mxu0 0.0
    %1291 = vmatpush2.msra.mxu0 0.0
    %1292 = vmatprep.subr.mxu0 0.0
    %1293 = vmatpush2.msra.mxu0 0.0
    %1294 = vmatprep.subr.mxu0 0.0
    %1295 = vmatpush2.msra.mxu0 0.0
    %1296 = vmatprep.subr.mxu0 0.0
    %1297 = vmatpush2.msra.mxu0 0.0
    %1298 = vmatprep.subr.mxu0 0.0
    %1299 = vmatpush2.msra.mxu0 0.0
    %1300 = vmatprep.subr.mxu0 0.0
    %1301 = vmatpush2.msra.mxu0 0.0
    %1302 = vmatprep.subr.mxu0 0.0
    %1303 = vmatpush2.msra.mxu0 0.0
    %1304 = vmatprep.subr.mxu0 0.0
    %1305 = vmatpush2.msra.mxu0 0.0
    %1306 = vmatprep.subr.mxu0 0.0
    %1307 = vmatpush2.msra.mxu0 0.0
    %1308 = vmatprep.subr.mxu0 0.0
    %1309 = vmatpush2.msra.mxu0 0.0
    %1310 = vmatprep.subr.mxu0 0.0
    %1311 = vmatpush2.msra.mxu0 0.0
    %1312 = vmatprep.subr.mxu0 0.0
    %1313 = vmatpush2.msra.mxu0 0.0
    %1314 = vmatprep.mubr.f32.mxu0 0.0
    %1315 = vmatmul.mubr.f32.gmra.mxu0 %v1177
    %v1316 = vpop.f32.mrf.mxu0
    %v1317 = vadd.f32 0.0, %v1316
    %v1318 = vpop.f32.mrf.mxu0
    %v1319 = vadd.f32 0.0, %v1318
    %1320 = vdwg.mxu0
    %1321 = vmatprep.subr.mxu0 0.0
    %1322 = vmatpush1.msra.mxu0 0.0
    %1323 = vmatprep.subr.mxu0 0.0
    %1324 = vmatpush1.msra.mxu0 0.0
    %1325 = vmatprep.subr.mxu0 0.0
    %1326 = vmatpush1.msra.mxu0 0.0
    %1327 = vmatprep.subr.mxu0 0.0
    %1328 = vmatpush1.msra.mxu0 0.0
    %1329 = vmatprep.subr.mxu0 0.0
    %1330 = vmatpush1.msra.mxu0 0.0
    %1331 = vmatprep.subr.mxu0 0.0
    %1332 = vmatpush1.msra.mxu0 0.0
    %1333 = vmatprep.subr.mxu0 0.0
    %1334 = vmatpush1.msra.mxu0 0.0
    %1335 = vmatprep.subr.mxu0 0.0
    %1336 = vmatpush1.msra.mxu0 0.0
    %1337 = vmatprep.subr.mxu0 0.0
    %1338 = vmatpush1.msra.mxu0 0.0
    %1339 = vmatprep.subr.mxu0 0.0
    %1340 = vmatpush1.msra.mxu0 0.0
    %1341 = vmatprep.subr.mxu0 0.0
    %1342 = vmatpush1.msra.mxu0 0.0
    %1343 = vmatprep.subr.mxu0 0.0
    %1344 = vmatpush1.msra.mxu0 0.0
    %1345 = vmatprep.subr.mxu0 0.0
    %1346 = vmatpush1.msra.mxu0 0.0
    %1347 = vmatprep.subr.mxu0 0.0
    %1348 = vmatpush1.msra.mxu0 %v1161
    %1349 = vmatprep.subr.mxu0 0.0
    %1350 = vmatpush1.msra.mxu0 %v1156
    %1351 = vmatprep.subr.mxu0 0.0
    %1352 = vmatpush1.msra.mxu0 %v1151
    %1353 = vmatprep.subr.mxu0 0.0
    %1354 = vmatpush2.msra.mxu0 0.0
    %1355 = vmatprep.subr.mxu0 0.0
    %1356 = vmatpush2.msra.mxu0 0.0
    %1357 = vmatprep.subr.mxu0 0.0
    %1358 = vmatpush2.msra.mxu0 0.0
    %1359 = vmatprep.subr.mxu0 0.0
    %1360 = vmatpush2.msra.mxu0 0.0
    %1361 = vmatprep.subr.mxu0 0.0
    %1362 = vmatpush2.msra.mxu0 0.0
    %1363 = vmatprep.subr.mxu0 0.0
    %1364 = vmatpush2.msra.mxu0 0.0
    %1365 = vmatprep.subr.mxu0 0.0
    %1366 = vmatpush2.msra.mxu0 0.0
    %1367 = vmatprep.subr.mxu0 0.0
    %1368 = vmatpush2.msra.mxu0 0.0
    %1369 = vmatprep.subr.mxu0 0.0
    %1370 = vmatpush2.msra.mxu0 0.0
    %1371 = vmatprep.subr.mxu0 0.0
    %1372 = vmatpush2.msra.mxu0 0.0
    %1373 = vmatprep.subr.mxu0 0.0
    %1374 = vmatpush2.msra.mxu0 0.0
    %1375 = vmatprep.subr.mxu0 0.0
    %1376 = vmatpush2.msra.mxu0 0.0
    %1377 = vmatprep.subr.mxu0 0.0
    %1378 = vmatpush2.msra.mxu0 0.0
    %1379 = vmatprep.subr.mxu0 0.0
    %1380 = vmatpush2.msra.mxu0 0.0
    %1381 = vmatprep.subr.mxu0 0.0
    %1382 = vmatpush2.msra.mxu0 0.0
    %1383 = vmatprep.subr.mxu0 0.0
    %1384 = vmatpush2.msra.mxu0 0.0
    %1385 = vmatprep.mubr.f32.mxu0 0.0
    %1386 = vmatmul.mubr.f32.gmra.mxu0 %v1177
    %v1387 = vpop.f32.mrf.mxu0
    %v1388 = vadd.f32 0.0, %v1387
    %v1389 = vpop.f32.mrf.mxu0
    %1390 = vdwg.mxu0
    %v1391 = vadd.f32 %v859, %v1246
    %v1392 = vadd.f32 %v861, %v1248
    %v1393 = vadd.f32 %v930, %v1317
    %v1394 = vadd.f32 %v932, %v1319
    %v1395 = vadd.f32 %v1001, %v1388
    %1397 = vset.pattern.permute.xlu0 0
    %1398 = vperm.xlu0 %1397, %v193
    %v1399 = vpop.permute.xlu0 %1398
    %v1401 = vadd.f32 %v1391, %v1399
    %v1402 = vadd.f32 %v1392, %v1399
    %v1403 = vadd.f32 %v1393, %v1399
    %v1404 = vadd.f32 %v1394, %v1399
    %v1405 = vadd.f32 %v1395, %v1399
    %v1406 = vmax.f32 %v1401, 0.0
    %v1407 = vmax.f32 %v1402, 0.0
    %v1408 = vmax.f32 %v1403, 0.0
    %v1409 = vmax.f32 %v1404, 0.0
    %v1410 = vmax.f32 %v1405, 0.0
    %v1412 = vlaneseq
    %v1413 = vshrl.u32 %v1412, 7
    %v1414 = vsub.s32 0, %v1413
    %v1415 = vrot.slane %v71, %v1414
    %v1416 = vlaneseq
    %v1417 = vshrl.u32 %v1416, 7
    %v1418 = vsub.s32 1, %v1417
    %v1419 = vrot.slane %v71, %v1418
    %v1420 = vlaneseq
    %v1421 = vshrl.u32 %v1420, 7
    %v1422 = vsub.s32 2, %v1421
    %v1423 = vrot.slane %v71, %v1422
    %v1424 = vlaneseq
    %v1425 = vshrl.u32 %v1424, 7
    %v1426 = vsub.s32 3, %v1425
    %v1427 = vrot.slane %v71, %v1426
    %v1428 = vlaneseq
    %v1429 = vshrl.u32 %v1428, 7
    %v1430 = vsub.s32 4, %v1429
    %v1431 = vrot.slane %v71, %v1430
    %v1437 = vmul.f32 %v1406, %v1415
    %v1438 = vmul.f32 %v1407, %v1419
    %v1439 = vmul.f32 %v1408, %v1423
    %v1440 = vmul.f32 %v1409, %v1427
    %v1441 = vmul.f32 %v1410, %v1431
    %v1446 = vcombine.low %v1437, %v1438
    %v1447 = vcombine.low %v1439, %v1440
    %1450 = vst [vmem:[#allocation3 + $0x4] sm:$0xff] %v1446
    %1451 = vst [vmem:[#allocation3 + $0xc] sm:$0xff] %v1447
    %1452 = vst [vmem:[#allocation3 + $0x14] sm:$0xf] %v1441
    %v1453 = vld [vmem:[%s7] sm:$0xff]
    %v1454 = vld [vmem:[#allocation3] sm:$0xff]
    %v1455 = vld [vmem:[#allocation3 + $0x8] sm:$0xff]
    %v1456 = vld [vmem:[#allocation3 + $0x10] sm:$0xff]
    %v1457 = vcombine.low %v204, %v208
    %v1458 = vcombine.low %v212, %v216
    %1459 = vrot.lane.b32.xlu0 %v1457, 111
    %v1460 = vpop.permute.xlu0 %1459
    %1461 = vrot.lane.b32.xlu0 %v1458, 111
    %v1462 = vpop.permute.xlu0 %1461
    %v1463 = vrot.slane %v1460, 4
    %v1464 = vrot.slane %v1462, 4
    %v1465 = vrot.slane %v230, 4
    %v1466 = vsel %vm231, %v1463, %v1460
    %vm1467 = vcmask 1043456
    %v1468 = vsel %vm1467, %v1463, %v1464
    %v1469 = vsel %vm231, %v1468, %v1462
    %v1470 = vsel %vm1467, %v1464, %v1465
    %v1471 = vsel %vm231, %v1470, %v230
    %v1475 = vmul.f32 %v1454, %v1466
    %v1476 = vmul.f32 %v1455, %v1469
    %v1477 = vmul.f32 %v1456, %v1471
    %v1478 = vcombine.low %v252, %v256
    %v1479 = vcombine.low %v260, %v264
    %1480 = vrot.lane.b32.xlu0 %v1478, 113
    %v1481 = vpop.permute.xlu0 %1480
    %1482 = vrot.lane.b32.xlu0 %v1479, 113
    %v1483 = vpop.permute.xlu0 %1482
    %v1484 = vrot.slane %v1481, 4
    %v1485 = vrot.slane %v1483, 4
    %v1486 = vrot.slane %v278, 4
    %v1487 = vsel %vm279, %v1484, %v1481
    %v1488 = vsel %vm1467, %v1484, %v1485
    %v1489 = vsel %vm279, %v1488, %v1483
    %v1490 = vsel %vm1467, %v1485, %v1486
    %v1491 = vsel %vm279, %v1490, %v278
    %v1495 = vmul.f32 %v1454, %v1487
    %v1496 = vmul.f32 %v1455, %v1489
    %v1497 = vmul.f32 %v1456, %v1491
    %v1501 = vcombine.high %v1475, %v1475
    %v1502 = vcombine.high %v1476, %v1476
    %v1503 = vcombine.high %v1477, %v1477
    %v1510 = vcombine.low %v1454, %v1454
    %v1511 = vcombine.low %v1455, %v1455
    %v1512 = vcombine.low %v1456, %v1456
    %1513 = vrot.lane.b32.xlu0 %v1510, 127
    %v1514 = vpop.permute.xlu0 %1513
    %1515 = vrot.lane.b32.xlu0 %v1454, 127
    %v1516 = vpop.permute.xlu0 %1515
    %1517 = vrot.lane.b32.xlu0 %v1511, 127
    %v1518 = vpop.permute.xlu0 %1517
    %1519 = vrot.lane.b32.xlu0 %v1455, 127
    %v1520 = vpop.permute.xlu0 %1519
    %1521 = vrot.lane.b32.xlu0 %v1512, 127
    %v1522 = vpop.permute.xlu0 %1521
    %1523 = vrot.lane.b32.xlu0 %v1456, 127
    %v1524 = vpop.permute.xlu0 %1523
    %v1525 = vsel %vm314, %v1514, %v1516
    %v1526 = vsel %vm314, %v1516, %v1518
    %v1527 = vsel %vm314, %v1518, %v1520
    %v1528 = vsel %vm314, %v1520, %v1522
    %v1529 = vsel %vm314, %v1522, %v1524
    %v1539 = vcombine.high %v1495, %v1495
    %v1540 = vcombine.high %v1496, %v1496
    %v1541 = vcombine.high %v1497, %v1497
    %1542 = vrot.lane.b32.xlu0 %v1495, 126
    %v1543 = vpop.permute.xlu0 %1542
    %1544 = vrot.lane.b32.xlu0 %v1539, 126
    %v1545 = vpop.permute.xlu0 %1544
    %1546 = vrot.lane.b32.xlu0 %v1496, 126
    %v1547 = vpop.permute.xlu0 %1546
    %1548 = vrot.lane.b32.xlu0 %v1540, 126
    %v1549 = vpop.permute.xlu0 %1548
    %1550 = vrot.lane.b32.xlu0 %v1497, 126
    %v1551 = vpop.permute.xlu0 %1550
    %1552 = vrot.lane.b32.xlu0 %v1541, 126
    %v1553 = vpop.permute.xlu0 %1552
    %v1554 = vsel %vm338, %v1543, %v1545
    %v1555 = vsel %vm338, %v1545, %v1547
    %v1556 = vsel %vm338, %v1547, %v1549
    %v1557 = vsel %vm338, %v1549, %v1551
    %v1558 = vsel %vm338, %v1551, %v1553
    %v1559 = vsel %vm1467, %v1475, %v1525
    %v1560 = vsel %vm1467, %v1501, %v1526
    %v1561 = vsel %vm1467, %v1476, %v1527
    %v1562 = vsel %vm1467, %v1502, %v1528
    %v1563 = vsel %vm1467, %v1477, %v1529
    %v1564 = vsel %vm1467, %v1503, %v1524
    %v1565 = vld [vmem:[%s6] sm:$0xff]
    %1566 = vrot.lane.b32.xlu0 %v1457, 127
    %v1567 = vpop.permute.xlu0 %1566
    %1568 = vrot.lane.b32.xlu0 %v1458, 127
    %v1569 = vpop.permute.xlu0 %1568
    %v1570 = vrot.slane %v1567, 4
    %v1571 = vrot.slane %v1569, 4
    %v1572 = vrot.slane %v354, 4
    %v1573 = vsel %vm314, %v1570, %v1567
    %v1574 = vsel %vm1467, %v1570, %v1571
    %v1575 = vsel %vm314, %v1574, %v1569
    %v1576 = vsel %vm1467, %v1571, %v1572
    %v1577 = vsel %vm314, %v1576, %v354
    %v1581 = vmul.f32 %v1454, %v1573
    %v1582 = vmul.f32 %v1455, %v1575
    %v1583 = vmul.f32 %v1456, %v1577
    %v1584 = vld [vmem:[#allocation3 + $0x4] sm:$0xff]
    %v1585 = vld [vmem:[#allocation3 + $0xc] sm:$0xff]
    %v1586 = vld [vmem:[#allocation3 + $0x14] sm:$0xf]
    %v1587 = vld [vmem:[#allocation3 + $0x4] sm:$0xff]
    %v1588 = vld [vmem:[#allocation3 + $0xc] sm:$0xff]
    %v1589 = vld [vmem:[#allocation3 + $0x14] sm:$0xff]
    %1590 = vrot.lane.b32.xlu0 %v1478, 1
    %v1591 = vpop.permute.xlu0 %1590
    %1592 = vrot.lane.b32.xlu0 %v1479, 1
    %v1593 = vpop.permute.xlu0 %1592
    %v1594 = vrot.slane %v1591, 4
    %v1595 = vrot.slane %v1593, 4
    %v1596 = vrot.slane %v386, 4
    %v1597 = vsel %vm387, %v1594, %v1591
    %v1598 = vsel %vm1467, %v1594, %v1595
    %v1599 = vsel %vm387, %v1598, %v1593
    %v1600 = vsel %vm1467, %v1595, %v1596
    %v1601 = vsel %vm387, %v1600, %v386
    %v1605 = vmul.f32 %v1587, %v1597
    %v1606 = vmul.f32 %v1588, %v1599
    %v1607 = vmul.f32 %v1589, %v1601
    %v1611 = vcombine.high %v1581, %v1581
    %v1612 = vcombine.high %v1582, %v1582
    %v1613 = vcombine.high %v1583, %v1583
    %v1620 = vcombine.low %v1584, %v1584
    %v1621 = vcombine.low %v1585, %v1585
    %v1622 = vcombine.low %v1586, %v1586
    %1623 = vrot.lane.b32.xlu0 %v1620, 127
    %v1624 = vpop.permute.xlu0 %1623
    %1625 = vrot.lane.b32.xlu0 %v1584, 127
    %v1626 = vpop.permute.xlu0 %1625
    %1627 = vrot.lane.b32.xlu0 %v1621, 127
    %v1628 = vpop.permute.xlu0 %1627
    %1629 = vrot.lane.b32.xlu0 %v1585, 127
    %v1630 = vpop.permute.xlu0 %1629
    %1631 = vrot.lane.b32.xlu0 %v1622, 127
    %v1632 = vpop.permute.xlu0 %1631
    %v1633 = vsel %vm314, %v1624, %v1626
    %v1634 = vsel %vm314, %v1626, %v1628
    %v1635 = vsel %vm314, %v1628, %v1630
    %v1636 = vsel %vm314, %v1630, %v1632
    %v1646 = vcombine.high %v1605, %v1605
    %v1647 = vcombine.high %v1606, %v1606
    %v1648 = vcombine.high %v1607, %v1607
    %1649 = vrot.lane.b32.xlu0 %v1605, 126
    %v1650 = vpop.permute.xlu0 %1649
    %1651 = vrot.lane.b32.xlu0 %v1646, 126
    %v1652 = vpop.permute.xlu0 %1651
    %1653 = vrot.lane.b32.xlu0 %v1606, 126
    %v1654 = vpop.permute.xlu0 %1653
    %1655 = vrot.lane.b32.xlu0 %v1647, 126
    %v1656 = vpop.permute.xlu0 %1655
    %1657 = vrot.lane.b32.xlu0 %v1607, 126
    %v1658 = vpop.permute.xlu0 %1657
    %1659 = vrot.lane.b32.xlu0 %v1648, 126
    %v1660 = vpop.permute.xlu0 %1659
    %v1661 = vsel %vm338, %v1650, %v1652
    %v1662 = vsel %vm338, %v1652, %v1654
    %v1663 = vsel %vm338, %v1654, %v1656
    %v1664 = vsel %vm338, %v1656, %v1658
    %v1665 = vsel %vm338, %v1658, %v1660
    %v1666 = vsel %vm1467, %v1581, %v1624
    %v1667 = vsel %vm1467, %v1611, %v1633
    %v1668 = vsel %vm1467, %v1582, %v1634
    %v1669 = vsel %vm1467, %v1612, %v1635
    %v1670 = vsel %vm1467, %v1583, %v1636
    %v1671 = vsel %vm1467, %v1613, %v1632
    %1673 = vrot.lane.b32.xlu0 %v1565, 116
    %v1674 = vpop.permute.xlu0 %1673
    %1681 = vrot.lane.b32.xlu0 %v1666, 1
    %v1682 = vpop.permute.xlu0 %1681
    %1683 = vrot.lane.b32.xlu0 %v1667, 1
    %v1684 = vpop.permute.xlu0 %1683
    %1685 = vrot.lane.b32.xlu0 %v1668, 1
    %v1686 = vpop.permute.xlu0 %1685
    %1687 = vrot.lane.b32.xlu0 %v1669, 1
    %v1688 = vpop.permute.xlu0 %1687
    %1689 = vrot.lane.b32.xlu0 %v1670, 1
    %v1690 = vpop.permute.xlu0 %1689
    %1691 = vrot.lane.b32.xlu0 %v1671, 1
    %v1692 = vpop.permute.xlu0 %1691
    %1693 = vrot.lane.b32.xlu0 %v1650, 1
    %v1694 = vpop.permute.xlu0 %1693
    %1695 = vrot.lane.b32.xlu0 %v1661, 1
    %v1696 = vpop.permute.xlu0 %1695
    %1697 = vrot.lane.b32.xlu0 %v1662, 1
    %v1698 = vpop.permute.xlu0 %1697
    %1699 = vrot.lane.b32.xlu0 %v1663, 1
    %v1700 = vpop.permute.xlu0 %1699
    %1701 = vrot.lane.b32.xlu0 %v1664, 1
    %v1702 = vpop.permute.xlu0 %1701
    %1703 = vrot.lane.b32.xlu0 %v1665, 1
    %v1704 = vpop.permute.xlu0 %1703
    %v1705 = vsel %vm387, %v1682, %v1684
    %v1706 = vsel %vm387, %v1684, %v1686
    %v1707 = vsel %vm387, %v1686, %v1688
    %v1708 = vsel %vm387, %v1688, %v1690
    %v1709 = vsel %vm387, %v1690, %v1692
    %v1710 = vsel %vm387, %v1694, %v1696
    %v1711 = vsel %vm387, %v1696, %v1698
    %v1712 = vsel %vm387, %v1698, %v1700
    %v1713 = vsel %vm387, %v1700, %v1702
    %v1714 = vsel %vm387, %v1702, %v1704
    %vm1720 = vcmask 97280
    %v1721 = vsel %vm1720, %v1674, 0
    %v1723 = vsel %vm1467, %v1710, 0
    %v1725 = vsel %vm1467, %v1711, 0
    %v1727 = vsel %vm1467, %v1712, 0
    %v1729 = vsel %vm1467, %v1713, 0
    %v1731 = vsel %vm1467, %v1714, 0
    %1733 = vmatprep.subr.mxu0 0.0
    %1734 = vmatpush1.msra.mxu0 0.0
    %1735 = vmatprep.subr.mxu0 0.0
    %1736 = vmatpush1.msra.mxu0 0.0
    %1737 = vmatprep.subr.mxu0 0.0
    %1738 = vmatpush1.msra.mxu0 0.0
    %1739 = vmatprep.subr.mxu0 0.0
    %1740 = vmatpush1.msra.mxu0 0.0
    %1741 = vmatprep.subr.mxu0 0.0
    %1742 = vmatpush1.msra.mxu0 0.0
    %1743 = vmatprep.subr.mxu0 0.0
    %1744 = vmatpush1.msra.mxu0 0.0
    %1745 = vmatprep.subr.mxu0 0.0
    %1746 = vmatpush1.msra.mxu0 0.0
    %1747 = vmatprep.subr.mxu0 0.0
    %1748 = vmatpush1.msra.mxu0 0.0
    %1749 = vmatprep.subr.mxu0 0.0
    %1750 = vmatpush1.msra.mxu0 0.0
    %1751 = vmatprep.subr.mxu0 0.0
    %1752 = vmatpush1.msra.mxu0 0.0
    %1753 = vmatprep.subr.mxu0 0.0
    %1754 = vmatpush1.msra.mxu0 0.0
    %1755 = vmatprep.subr.mxu0 0.0
    %1756 = vmatpush1.msra.mxu0 0.0
    %1757 = vmatprep.subr.mxu0 0.0
    %1758 = vmatpush1.msra.mxu0 0.0
    %1759 = vmatprep.subr.mxu0 0.0
    %1760 = vmatpush1.msra.mxu0 0.0
    %1761 = vmatprep.subr.mxu0 %v1725
    %1762 = vmatpush1.msra.mxu0 %v1723
    %1763 = vmatprep.subr.mxu0 %v1706
    %1764 = vmatpush1.msra.mxu0 %v1705
    %1765 = vmatprep.subr.mxu0 0.0
    %1766 = vmatpush2.msra.mxu0 0.0
    %1767 = vmatprep.subr.mxu0 0.0
    %1768 = vmatpush2.msra.mxu0 0.0
    %1769 = vmatprep.subr.mxu0 0.0
    %1770 = vmatpush2.msra.mxu0 0.0
    %1771 = vmatprep.subr.mxu0 0.0
    %1772 = vmatpush2.msra.mxu0 0.0
    %1773 = vmatprep.subr.mxu0 0.0
    %1774 = vmatpush2.msra.mxu0 0.0
    %1775 = vmatprep.subr.mxu0 0.0
    %1776 = vmatpush2.msra.mxu0 0.0
    %1777 = vmatprep.subr.mxu0 0.0
    %1778 = vmatpush2.msra.mxu0 0.0
    %1779 = vmatprep.subr.mxu0 0.0
    %1780 = vmatpush2.msra.mxu0 0.0
    %1781 = vmatprep.subr.mxu0 0.0
    %1782 = vmatpush2.msra.mxu0 0.0
    %1783 = vmatprep.subr.mxu0 0.0
    %1784 = vmatpush2.msra.mxu0 0.0
    %1785 = vmatprep.subr.mxu0 0.0
    %1786 = vmatpush2.msra.mxu0 0.0
    %1787 = vmatprep.subr.mxu0 0.0
    %1788 = vmatpush2.msra.mxu0 0.0
    %1789 = vmatprep.subr.mxu0 0.0
    %1790 = vmatpush2.msra.mxu0 0.0
    %1791 = vmatprep.subr.mxu0 0.0
    %1792 = vmatpush2.msra.mxu0 0.0
    %1793 = vmatprep.subr.mxu0 0.0
    %1794 = vmatpush2.msra.mxu0 0.0
    %1795 = vmatprep.subr.mxu0 0.0
    %1796 = vmatpush2.msra.mxu0 0.0
    %1797 = vmatprep.mubr.f32.mxu0 0.0
    %1798 = vmatmul.mubr.f32.gmra.mxu0 %v1721
    %v1799 = vpop.f32.mrf.mxu0
    %v1800 = vadd.f32 0.0, %v1799
    %v1801 = vpop.f32.mrf.mxu0
    %v1802 = vadd.f32 0.0, %v1801
    %1803 = vdwg.mxu0
    %1804 = vmatprep.subr.mxu0 0.0
    %1805 = vmatpush1.msra.mxu0 0.0
    %1806 = vmatprep.subr.mxu0 0.0
    %1807 = vmatpush1.msra.mxu0 0.0
    %1808 = vmatprep.subr.mxu0 0.0
    %1809 = vmatpush1.msra.mxu0 0.0
    %1810 = vmatprep.subr.mxu0 0.0
    %1811 = vmatpush1.msra.mxu0 0.0
    %1812 = vmatprep.subr.mxu0 0.0
    %1813 = vmatpush1.msra.mxu0 0.0
    %1814 = vmatprep.subr.mxu0 0.0
    %1815 = vmatpush1.msra.mxu0 0.0
    %1816 = vmatprep.subr.mxu0 0.0
    %1817 = vmatpush1.msra.mxu0 0.0
    %1818 = vmatprep.subr.mxu0 0.0
    %1819 = vmatpush1.msra.mxu0 0.0
    %1820 = vmatprep.subr.mxu0 0.0
    %1821 = vmatpush1.msra.mxu0 0.0
    %1822 = vmatprep.subr.mxu0 0.0
    %1823 = vmatpush1.msra.mxu0 0.0
    %1824 = vmatprep.subr.mxu0 0.0
    %1825 = vmatpush1.msra.mxu0 0.0
    %1826 = vmatprep.subr.mxu0 0.0
    %1827 = vmatpush1.msra.mxu0 0.0
    %1828 = vmatprep.subr.mxu0 0.0
    %1829 = vmatpush1.msra.mxu0 0.0
    %1830 = vmatprep.subr.mxu0 0.0
    %1831 = vmatpush1.msra.mxu0 0.0
    %1832 = vmatprep.subr.mxu0 %v1729
    %1833 = vmatpush1.msra.mxu0 %v1727
    %1834 = vmatprep.subr.mxu0 %v1708
    %1835 = vmatpush1.msra.mxu0 %v1707
    %1836 = vmatprep.subr.mxu0 0.0
    %1837 = vmatpush2.msra.mxu0 0.0
    %1838 = vmatprep.subr.mxu0 0.0
    %1839 = vmatpush2.msra.mxu0 0.0
    %1840 = vmatprep.subr.mxu0 0.0
    %1841 = vmatpush2.msra.mxu0 0.0
    %1842 = vmatprep.subr.mxu0 0.0
    %1843 = vmatpush2.msra.mxu0 0.0
    %1844 = vmatprep.subr.mxu0 0.0
    %1845 = vmatpush2.msra.mxu0 0.0
    %1846 = vmatprep.subr.mxu0 0.0
    %1847 = vmatpush2.msra.mxu0 0.0
    %1848 = vmatprep.subr.mxu0 0.0
    %1849 = vmatpush2.msra.mxu0 0.0
    %1850 = vmatprep.subr.mxu0 0.0
    %1851 = vmatpush2.msra.mxu0 0.0
    %1852 = vmatprep.subr.mxu0 0.0
    %1853 = vmatpush2.msra.mxu0 0.0
    %1854 = vmatprep.subr.mxu0 0.0
    %1855 = vmatpush2.msra.mxu0 0.0
    %1856 = vmatprep.subr.mxu0 0.0
    %1857 = vmatpush2.msra.mxu0 0.0
    %1858 = vmatprep.subr.mxu0 0.0
    %1859 = vmatpush2.msra.mxu0 0.0
    %1860 = vmatprep.subr.mxu0 0.0
    %1861 = vmatpush2.msra.mxu0 0.0
    %1862 = vmatprep.subr.mxu0 0.0
    %1863 = vmatpush2.msra.mxu0 0.0
    %1864 = vmatprep.subr.mxu0 0.0
    %1865 = vmatpush2.msra.mxu0 0.0
    %1866 = vmatprep.subr.mxu0 0.0
    %1867 = vmatpush2.msra.mxu0 0.0
    %1868 = vmatprep.mubr.f32.mxu0 0.0
    %1869 = vmatmul.mubr.f32.gmra.mxu0 %v1721
    %v1870 = vpop.f32.mrf.mxu0
    %v1871 = vpop.f32.mrf.mxu0
    %v1872 = vadd.f32 0.0, %v1871
    %1873 = vdwg.mxu0
    %1874 = vmatprep.subr.mxu0 0.0
    %1875 = vmatpush1.msra.mxu0 0.0
    %1876 = vmatprep.subr.mxu0 0.0
    %1877 = vmatpush1.msra.mxu0 0.0
    %1878 = vmatprep.subr.mxu0 0.0
    %1879 = vmatpush1.msra.mxu0 0.0
    %1880 = vmatprep.subr.mxu0 0.0
    %1881 = vmatpush1.msra.mxu0 0.0
    %1882 = vmatprep.subr.mxu0 0.0
    %1883 = vmatpush1.msra.mxu0 0.0
    %1884 = vmatprep.subr.mxu0 0.0
    %1885 = vmatpush1.msra.mxu0 0.0
    %1886 = vmatprep.subr.mxu0 0.0
    %1887 = vmatpush1.msra.mxu0 0.0
    %1888 = vmatprep.subr.mxu0 0.0
    %1889 = vmatpush1.msra.mxu0 0.0
    %1890 = vmatprep.subr.mxu0 0.0
    %1891 = vmatpush1.msra.mxu0 0.0
    %1892 = vmatprep.subr.mxu0 0.0
    %1893 = vmatpush1.msra.mxu0 0.0
    %1894 = vmatprep.subr.mxu0 0.0
    %1895 = vmatpush1.msra.mxu0 0.0
    %1896 = vmatprep.subr.mxu0 0.0
    %1897 = vmatpush1.msra.mxu0 0.0
    %1898 = vmatprep.subr.mxu0 0.0
    %1899 = vmatpush1.msra.mxu0 0.0
    %1900 = vmatprep.subr.mxu0 0.0
    %1901 = vmatpush1.msra.mxu0 0.0
    %1902 = vmatprep.subr.mxu0 0.0
    %1903 = vmatpush1.msra.mxu0 %v1731
    %1904 = vmatprep.subr.mxu0 0.0
    %1905 = vmatpush1.msra.mxu0 %v1709
    %1906 = vmatprep.subr.mxu0 0.0
    %1907 = vmatpush2.msra.mxu0 0.0
    %1908 = vmatprep.subr.mxu0 0.0
    %1909 = vmatpush2.msra.mxu0 0.0
    %1910 = vmatprep.subr.mxu0 0.0
    %1911 = vmatpush2.msra.mxu0 0.0
    %1912 = vmatprep.subr.mxu0 0.0
    %1913 = vmatpush2.msra.mxu0 0.0
    %1914 = vmatprep.subr.mxu0 0.0
    %1915 = vmatpush2.msra.mxu0 0.0
    %1916 = vmatprep.subr.mxu0 0.0
    %1917 = vmatpush2.msra.mxu0 0.0
    %1918 = vmatprep.subr.mxu0 0.0
    %1919 = vmatpush2.msra.mxu0 0.0
    %1920 = vmatprep.subr.mxu0 0.0
    %1921 = vmatpush2.msra.mxu0 0.0
    %1922 = vmatprep.subr.mxu0 0.0
    %1923 = vmatpush2.msra.mxu0 0.0
    %1924 = vmatprep.subr.mxu0 0.0
    %1925 = vmatpush2.msra.mxu0 0.0
    %1926 = vmatprep.subr.mxu0 0.0
    %1927 = vmatpush2.msra.mxu0 0.0
    %1928 = vmatprep.subr.mxu0 0.0
    %1929 = vmatpush2.msra.mxu0 0.0
    %1930 = vmatprep.subr.mxu0 0.0
    %1931 = vmatpush2.msra.mxu0 0.0
    %1932 = vmatprep.subr.mxu0 0.0
    %1933 = vmatpush2.msra.mxu0 0.0
    %1934 = vmatprep.subr.mxu0 0.0
    %1935 = vmatpush2.msra.mxu0 0.0
    %1936 = vmatprep.subr.mxu0 0.0
    %1937 = vmatpush2.msra.mxu0 0.0
    %1938 = vmatprep.mubr.f32.mxu0 0.0
    %1939 = vmatmul.mubr.f32.gmra.mxu0 %v1721
    %v1940 = vpop.f32.mrf.mxu0
    %v1941 = vadd.f32 0.0, %v1940
    %v1942 = vpop.f32.mrf.mxu0
    %1943 = vdwg.mxu0
    %1950 = vrot.lane.b32.xlu0 %v1559, 17
    %v1951 = vpop.permute.xlu0 %1950
    %1952 = vrot.lane.b32.xlu0 %v1560, 17
    %v1953 = vpop.permute.xlu0 %1952
    %1954 = vrot.lane.b32.xlu0 %v1561, 17
    %v1955 = vpop.permute.xlu0 %1954
    %1956 = vrot.lane.b32.xlu0 %v1562, 17
    %v1957 = vpop.permute.xlu0 %1956
    %1958 = vrot.lane.b32.xlu0 %v1563, 17
    %v1959 = vpop.permute.xlu0 %1958
    %1960 = vrot.lane.b32.xlu0 %v1564, 17
    %v1961 = vpop.permute.xlu0 %1960
    %1962 = vrot.lane.b32.xlu0 %v1554, 17
    %v1963 = vpop.permute.xlu0 %1962
    %1964 = vrot.lane.b32.xlu0 %v1555, 17
    %v1965 = vpop.permute.xlu0 %1964
    %1966 = vrot.lane.b32.xlu0 %v1556, 17
    %v1967 = vpop.permute.xlu0 %1966
    %1968 = vrot.lane.b32.xlu0 %v1557, 17
    %v1969 = vpop.permute.xlu0 %1968
    %1970 = vrot.lane.b32.xlu0 %v1558, 17
    %v1971 = vpop.permute.xlu0 %1970
    %1972 = vrot.lane.b32.xlu0 %v1553, 17
    %v1973 = vpop.permute.xlu0 %1972
    %v1974 = vsel %vm759, %v1951, %v1953
    %v1975 = vsel %vm759, %v1953, %v1955
    %v1976 = vsel %vm759, %v1955, %v1957
    %v1977 = vsel %vm759, %v1957, %v1959
    %v1978 = vsel %vm759, %v1959, %v1961
    %v1979 = vsel %vm759, %v1963, %v1965
    %v1980 = vsel %vm759, %v1965, %v1967
    %v1981 = vsel %vm759, %v1967, %v1969
    %v1982 = vsel %vm759, %v1969, %v1971
    %v1983 = vsel %vm759, %v1971, %v1973
    %v1989 = vsel %vm1720, %v1565, 0
    %v1991 = vsel %vm1467, %v1979, 0
    %v1993 = vsel %vm1467, %v1980, 0
    %v1995 = vsel %vm1467, %v1981, 0
    %v1997 = vsel %vm1467, %v1982, 0
    %v1999 = vsel %vm1467, %v1983, 0
    %2001 = vmatprep.subr.mxu0 0.0
    %2002 = vmatpush1.msra.mxu0 0.0
    %2003 = vmatprep.subr.mxu0 0.0
    %2004 = vmatpush1.msra.mxu0 0.0
    %2005 = vmatprep.subr.mxu0 0.0
    %2006 = vmatpush1.msra.mxu0 0.0
    %2007 = vmatprep.subr.mxu0 0.0
    %2008 = vmatpush1.msra.mxu0 0.0
    %2009 = vmatprep.subr.mxu0 0.0
    %2010 = vmatpush1.msra.mxu0 0.0
    %2011 = vmatprep.subr.mxu0 0.0
    %2012 = vmatpush1.msra.mxu0 0.0
    %2013 = vmatprep.subr.mxu0 0.0
    %2014 = vmatpush1.msra.mxu0 0.0
    %2015 = vmatprep.subr.mxu0 0.0
    %2016 = vmatpush1.msra.mxu0 0.0
    %2017 = vmatprep.subr.mxu0 0.0
    %2018 = vmatpush1.msra.mxu0 0.0
    %2019 = vmatprep.subr.mxu0 0.0
    %2020 = vmatpush1.msra.mxu0 0.0
    %2021 = vmatprep.subr.mxu0 0.0
    %2022 = vmatpush1.msra.mxu0 0.0
    %2023 = vmatprep.subr.mxu0 0.0
    %2024 = vmatpush1.msra.mxu0 0.0
    %2025 = vmatprep.subr.mxu0 0.0
    %2026 = vmatpush1.msra.mxu0 0.0
    %2027 = vmatprep.subr.mxu0 0.0
    %2028 = vmatpush1.msra.mxu0 0.0
    %2029 = vmatprep.subr.mxu0 %v1993
    %2030 = vmatpush1.msra.mxu0 %v1991
    %2031 = vmatprep.subr.mxu0 %v1975
    %2032 = vmatpush1.msra.mxu0 %v1974
    %2033 = vmatprep.subr.mxu0 0.0
    %2034 = vmatpush2.msra.mxu0 0.0
    %2035 = vmatprep.subr.mxu0 0.0
    %2036 = vmatpush2.msra.mxu0 0.0
    %2037 = vmatprep.subr.mxu0 0.0
    %2038 = vmatpush2.msra.mxu0 0.0
    %2039 = vmatprep.subr.mxu0 0.0
    %2040 = vmatpush2.msra.mxu0 0.0
    %2041 = vmatprep.subr.mxu0 0.0
    %2042 = vmatpush2.msra.mxu0 0.0
    %2043 = vmatprep.subr.mxu0 0.0
    %2044 = vmatpush2.msra.mxu0 0.0
    %2045 = vmatprep.subr.mxu0 0.0
    %2046 = vmatpush2.msra.mxu0 0.0
    %2047 = vmatprep.subr.mxu0 0.0
    %2048 = vmatpush2.msra.mxu0 0.0
    %2049 = vmatprep.subr.mxu0 0.0
    %2050 = vmatpush2.msra.mxu0 0.0
    %2051 = vmatprep.subr.mxu0 0.0
    %2052 = vmatpush2.msra.mxu0 0.0
    %2053 = vmatprep.subr.mxu0 0.0
    %2054 = vmatpush2.msra.mxu0 0.0
    %2055 = vmatprep.subr.mxu0 0.0
    %2056 = vmatpush2.msra.mxu0 0.0
    %2057 = vmatprep.subr.mxu0 0.0
    %2058 = vmatpush2.msra.mxu0 0.0
    %2059 = vmatprep.subr.mxu0 0.0
    %2060 = vmatpush2.msra.mxu0 0.0
    %2061 = vmatprep.subr.mxu0 0.0
    %2062 = vmatpush2.msra.mxu0 0.0
    %2063 = vmatprep.subr.mxu0 0.0
    %2064 = vmatpush2.msra.mxu0 0.0
    %2065 = vmatprep.mubr.f32.mxu0 0.0
    %2066 = vmatmul.mubr.f32.gmra.mxu0 %v1989
    %v2067 = vpop.f32.mrf.mxu0
    %v2068 = vadd.f32 %v1800, %v2067
    %v2069 = vpop.f32.mrf.mxu0
    %v2070 = vadd.f32 %v1802, %v2069
    %2071 = vdwg.mxu0
    %2072 = vmatprep.subr.mxu0 0.0
    %2073 = vmatpush1.msra.mxu0 0.0
    %2074 = vmatprep.subr.mxu0 0.0
    %2075 = vmatpush1.msra.mxu0 0.0
    %2076 = vmatprep.subr.mxu0 0.0
    %2077 = vmatpush1.msra.mxu0 0.0
    %2078 = vmatprep.subr.mxu0 0.0
    %2079 = vmatpush1.msra.mxu0 0.0
    %2080 = vmatprep.subr.mxu0 0.0
    %2081 = vmatpush1.msra.mxu0 0.0
    %2082 = vmatprep.subr.mxu0 0.0
    %2083 = vmatpush1.msra.mxu0 0.0
    %2084 = vmatprep.subr.mxu0 0.0
    %2085 = vmatpush1.msra.mxu0 0.0
    %2086 = vmatprep.subr.mxu0 0.0
    %2087 = vmatpush1.msra.mxu0 0.0
    %2088 = vmatprep.subr.mxu0 0.0
    %2089 = vmatpush1.msra.mxu0 0.0
    %2090 = vmatprep.subr.mxu0 0.0
    %2091 = vmatpush1.msra.mxu0 0.0
    %2092 = vmatprep.subr.mxu0 0.0
    %2093 = vmatpush1.msra.mxu0 0.0
    %2094 = vmatprep.subr.mxu0 0.0
    %2095 = vmatpush1.msra.mxu0 0.0
    %2096 = vmatprep.subr.mxu0 0.0
    %2097 = vmatpush1.msra.mxu0 0.0
    %2098 = vmatprep.subr.mxu0 0.0
    %2099 = vmatpush1.msra.mxu0 0.0
    %2100 = vmatprep.subr.mxu0 %v1997
    %2101 = vmatpush1.msra.mxu0 %v1995
    %2102 = vmatprep.subr.mxu0 %v1977
    %2103 = vmatpush1.msra.mxu0 %v1976
    %2104 = vmatprep.subr.mxu0 0.0
    %2105 = vmatpush2.msra.mxu0 0.0
    %2106 = vmatprep.subr.mxu0 0.0
    %2107 = vmatpush2.msra.mxu0 0.0
    %2108 = vmatprep.subr.mxu0 0.0
    %2109 = vmatpush2.msra.mxu0 0.0
    %2110 = vmatprep.subr.mxu0 0.0
    %2111 = vmatpush2.msra.mxu0 0.0
    %2112 = vmatprep.subr.mxu0 0.0
    %2113 = vmatpush2.msra.mxu0 0.0
    %2114 = vmatprep.subr.mxu0 0.0
    %2115 = vmatpush2.msra.mxu0 0.0
    %2116 = vmatprep.subr.mxu0 0.0
    %2117 = vmatpush2.msra.mxu0 0.0
    %2118 = vmatprep.subr.mxu0 0.0
    %2119 = vmatpush2.msra.mxu0 0.0
    %2120 = vmatprep.subr.mxu0 0.0
    %2121 = vmatpush2.msra.mxu0 0.0
    %2122 = vmatprep.subr.mxu0 0.0
    %2123 = vmatpush2.msra.mxu0 0.0
    %2124 = vmatprep.subr.mxu0 0.0
    %2125 = vmatpush2.msra.mxu0 0.0
    %2126 = vmatprep.subr.mxu0 0.0
    %2127 = vmatpush2.msra.mxu0 0.0
    %2128 = vmatprep.subr.mxu0 0.0
    %2129 = vmatpush2.msra.mxu0 0.0
    %2130 = vmatprep.subr.mxu0 0.0
    %2131 = vmatpush2.msra.mxu0 0.0
    %2132 = vmatprep.subr.mxu0 0.0
    %2133 = vmatpush2.msra.mxu0 0.0
    %2134 = vmatprep.subr.mxu0 0.0
    %2135 = vmatpush2.msra.mxu0 0.0
    %2136 = vmatprep.mubr.f32.mxu0 0.0
    %2137 = vmatmul.mubr.f32.gmra.mxu0 %v1989
    %v2138 = vpop.f32.mrf.mxu0
    %v2139 = vpop.f32.mrf.mxu0
    %v2140 = vadd.f32 %v1872, %v2139
    %2141 = vdwg.mxu0
    %2142 = vmatprep.subr.mxu0 0.0
    %2143 = vmatpush1.msra.mxu0 0.0
    %2144 = vmatprep.subr.mxu0 0.0
    %2145 = vmatpush1.msra.mxu0 0.0
    %2146 = vmatprep.subr.mxu0 0.0
    %2147 = vmatpush1.msra.mxu0 0.0
    %2148 = vmatprep.subr.mxu0 0.0
    %2149 = vmatpush1.msra.mxu0 0.0
    %2150 = vmatprep.subr.mxu0 0.0
    %2151 = vmatpush1.msra.mxu0 0.0
    %2152 = vmatprep.subr.mxu0 0.0
    %2153 = vmatpush1.msra.mxu0 0.0
    %2154 = vmatprep.subr.mxu0 0.0
    %2155 = vmatpush1.msra.mxu0 0.0
    %2156 = vmatprep.subr.mxu0 0.0
    %2157 = vmatpush1.msra.mxu0 0.0
    %2158 = vmatprep.subr.mxu0 0.0
    %2159 = vmatpush1.msra.mxu0 0.0
    %2160 = vmatprep.subr.mxu0 0.0
    %2161 = vmatpush1.msra.mxu0 0.0
    %2162 = vmatprep.subr.mxu0 0.0
    %2163 = vmatpush1.msra.mxu0 0.0
    %2164 = vmatprep.subr.mxu0 0.0
    %2165 = vmatpush1.msra.mxu0 0.0
    %2166 = vmatprep.subr.mxu0 0.0
    %2167 = vmatpush1.msra.mxu0 0.0
    %2168 = vmatprep.subr.mxu0 0.0
    %2169 = vmatpush1.msra.mxu0 0.0
    %2170 = vmatprep.subr.mxu0 0.0
    %2171 = vmatpush1.msra.mxu0 %v1999
    %2172 = vmatprep.subr.mxu0 0.0
    %2173 = vmatpush1.msra.mxu0 %v1978
    %2174 = vmatprep.subr.mxu0 0.0
    %2175 = vmatpush2.msra.mxu0 0.0
    %2176 = vmatprep.subr.mxu0 0.0
    %2177 = vmatpush2.msra.mxu0 0.0
    %2178 = vmatprep.subr.mxu0 0.0
    %2179 = vmatpush2.msra.mxu0 0.0
    %2180 = vmatprep.subr.mxu0 0.0
    %2181 = vmatpush2.msra.mxu0 0.0
    %2182 = vmatprep.subr.mxu0 0.0
    %2183 = vmatpush2.msra.mxu0 0.0
    %2184 = vmatprep.subr.mxu0 0.0
    %2185 = vmatpush2.msra.mxu0 0.0
    %2186 = vmatprep.subr.mxu0 0.0
    %2187 = vmatpush2.msra.mxu0 0.0
    %2188 = vmatprep.subr.mxu0 0.0
    %2189 = vmatpush2.msra.mxu0 0.0
    %2190 = vmatprep.subr.mxu0 0.0
    %2191 = vmatpush2.msra.mxu0 0.0
    %2192 = vmatprep.subr.mxu0 0.0
    %2193 = vmatpush2.msra.mxu0 0.0
    %2194 = vmatprep.subr.mxu0 0.0
    %2195 = vmatpush2.msra.mxu0 0.0
    %2196 = vmatprep.subr.mxu0 0.0
    %2197 = vmatpush2.msra.mxu0 0.0
    %2198 = vmatprep.subr.mxu0 0.0
    %2199 = vmatpush2.msra.mxu0 0.0
    %2200 = vmatprep.subr.mxu0 0.0
    %2201 = vmatpush2.msra.mxu0 0.0
    %2202 = vmatprep.subr.mxu0 0.0
    %2203 = vmatpush2.msra.mxu0 0.0
    %2204 = vmatprep.subr.mxu0 0.0
    %2205 = vmatpush2.msra.mxu0 0.0
    %2206 = vmatprep.mubr.f32.mxu0 0.0
    %2207 = vmatmul.mubr.f32.gmra.mxu0 %v1989
    %v2208 = vpop.f32.mrf.mxu0
    %v2209 = vadd.f32 %v1941, %v2208
    %v2210 = vpop.f32.mrf.mxu0
    %2211 = vdwg.mxu0
    %v2212 = vld [vmem:[#allocation3 + $0x4] sm:$0xff]
    %v2213 = vld [vmem:[#allocation3 + $0xc] sm:$0xff]
    %v2214 = vld [vmem:[#allocation3 + $0x14] sm:$0xff]
    %2215 = vrot.lane.b32.xlu0 %v1457, 15
    %v2216 = vpop.permute.xlu0 %2215
    %2217 = vrot.lane.b32.xlu0 %v1458, 15
    %v2218 = vpop.permute.xlu0 %2217
    %v2219 = vrot.slane %v2216, 4
    %v2220 = vrot.slane %v2218, 4
    %v2221 = vrot.slane %v1013, 4
    %v2222 = vsel %vm1014, %v2219, %v2216
    %v2223 = vsel %vm1467, %v2219, %v2220
    %v2224 = vsel %vm1014, %v2223, %v2218
    %v2225 = vsel %vm1467, %v2220, %v2221
    %v2226 = vsel %vm1014, %v2225, %v1013
    %v2230 = vmul.f32 %v2212, %v2222
    %v2231 = vmul.f32 %v2213, %v2224
    %v2232 = vmul.f32 %v2214, %v2226
    %2233 = vrot.lane.b32.xlu0 %v1478, 17
    %v2234 = vpop.permute.xlu0 %2233
    %2235 = vrot.lane.b32.xlu0 %v1479, 17
    %v2236 = vpop.permute.xlu0 %2235
    %v2237 = vrot.slane %v2234, 4
    %v2238 = vrot.slane %v2236, 4
    %v2239 = vrot.slane %v1040, 4
    %v2240 = vsel %vm759, %v2237, %v2234
    %v2241 = vsel %vm1467, %v2237, %v2238
    %v2242 = vsel %vm759, %v2241, %v2236
    %v2243 = vsel %vm1467, %v2238, %v2239
    %v2244 = vsel %vm759, %v2243, %v1040
    %v2248 = vmul.f32 %v2212, %v2240
    %v2249 = vmul.f32 %v2213, %v2242
    %v2250 = vmul.f32 %v2214, %v2244
    %v2254 = vcombine.high %v2230, %v2230
    %v2255 = vcombine.high %v2231, %v2231
    %v2256 = vcombine.high %v2232, %v2232
    %v2263 = vcombine.low %v2212, %v2212
    %v2264 = vcombine.low %v2213, %v2213
    %v2265 = vcombine.low %v2214, %v2214
    %2266 = vrot.lane.b32.xlu0 %v2263, 127
    %v2267 = vpop.permute.xlu0 %2266
    %2268 = vrot.lane.b32.xlu0 %v2212, 127
    %v2269 = vpop.permute.xlu0 %2268
    %2270 = vrot.lane.b32.xlu0 %v2264, 127
    %v2271 = vpop.permute.xlu0 %2270
    %2272 = vrot.lane.b32.xlu0 %v2213, 127
    %v2273 = vpop.permute.xlu0 %2272
    %2274 = vrot.lane.b32.xlu0 %v2265, 127
    %v2275 = vpop.permute.xlu0 %2274
    %2276 = vrot.lane.b32.xlu0 %v2214, 127
    %v2277 = vpop.permute.xlu0 %2276
    %v2278 = vsel %vm314, %v2267, %v2269
    %v2279 = vsel %vm314, %v2269, %v2271
    %v2280 = vsel %vm314, %v2271, %v2273
    %v2281 = vsel %vm314, %v2273, %v2275
    %v2282 = vsel %vm314, %v2275, %v2277
    %v2292 = vcombine.high %v2248, %v2248
    %v2293 = vcombine.high %v2249, %v2249
    %v2294 = vcombine.high %v2250, %v2250
    %2295 = vrot.lane.b32.xlu0 %v2248, 126
    %v2296 = vpop.permute.xlu0 %2295
    %2297 = vrot.lane.b32.xlu0 %v2292, 126
    %v2298 = vpop.permute.xlu0 %2297
    %2299 = vrot.lane.b32.xlu0 %v2249, 126
    %v2300 = vpop.permute.xlu0 %2299
    %2301 = vrot.lane.b32.xlu0 %v2293, 126
    %v2302 = vpop.permute.xlu0 %2301
    %2303 = vrot.lane.b32.xlu0 %v2250, 126
    %v2304 = vpop.permute.xlu0 %2303
    %2305 = vrot.lane.b32.xlu0 %v2294, 126
    %v2306 = vpop.permute.xlu0 %2305
    %v2307 = vsel %vm338, %v2296, %v2298
    %v2308 = vsel %vm338, %v2298, %v2300
    %v2309 = vsel %vm338, %v2300, %v2302
    %v2310 = vsel %vm338, %v2302, %v2304
    %v2311 = vsel %vm338, %v2304, %v2306
    %v2312 = vsel %vm1467, %v2230, %v2278
    %v2313 = vsel %vm1467, %v2254, %v2279
    %v2314 = vsel %vm1467, %v2231, %v2280
    %v2315 = vsel %vm1467, %v2255, %v2281
    %v2316 = vsel %vm1467, %v2232, %v2282
    %v2317 = vsel %vm1467, %v2256, %v2277
    %v2318 = vld [vmem:[%s6] sm:$0xff]
    %2320 = vrot.lane.b32.xlu0 %v2318, 104
    %v2321 = vpop.permute.xlu0 %2320
    %2328 = vrot.lane.b32.xlu0 %v2312, 113
    %v2329 = vpop.permute.xlu0 %2328
    %2330 = vrot.lane.b32.xlu0 %v2313, 113
    %v2331 = vpop.permute.xlu0 %2330
    %2332 = vrot.lane.b32.xlu0 %v2314, 113
    %v2333 = vpop.permute.xlu0 %2332
    %2334 = vrot.lane.b32.xlu0 %v2315, 113
    %v2335 = vpop.permute.xlu0 %2334
    %2336 = vrot.lane.b32.xlu0 %v2316, 113
    %v2337 = vpop.permute.xlu0 %2336
    %2338 = vrot.lane.b32.xlu0 %v2317, 113
    %v2339 = vpop.permute.xlu0 %2338
    %2340 = vrot.lane.b32.xlu0 %v2307, 113
    %v2341 = vpop.permute.xlu0 %2340
    %2342 = vrot.lane.b32.xlu0 %v2308, 113
    %v2343 = vpop.permute.xlu0 %2342
    %2344 = vrot.lane.b32.xlu0 %v2309, 113
    %v2345 = vpop.permute.xlu0 %2344
    %2346 = vrot.lane.b32.xlu0 %v2310, 113
    %v2347 = vpop.permute.xlu0 %2346
    %2348 = vrot.lane.b32.xlu0 %v2311, 113
    %v2349 = vpop.permute.xlu0 %2348
    %2350 = vrot.lane.b32.xlu0 %v2306, 113
    %v2351 = vpop.permute.xlu0 %2350
    %v2352 = vsel %vm279, %v2329, %v2331
    %v2353 = vsel %vm279, %v2331, %v2333
    %v2354 = vsel %vm279, %v2333, %v2335
    %v2355 = vsel %vm279, %v2335, %v2337
    %v2356 = vsel %vm279, %v2337, %v2339
    %v2357 = vsel %vm279, %v2341, %v2343
    %v2358 = vsel %vm279, %v2343, %v2345
    %v2359 = vsel %vm279, %v2345, %v2347
    %v2360 = vsel %vm279, %v2347, %v2349
    %v2361 = vsel %vm279, %v2349, %v2351
    %v2367 = vsel %vm1720, %v2321, 0
    %v2369 = vsel %vm1467, %v2357, 0
    %v2371 = vsel %vm1467, %v2358, 0
    %v2373 = vsel %vm1467, %v2359, 0
    %v2375 = vsel %vm1467, %v2360, 0
    %v2377 = vsel %vm1467, %v2361, 0
    %2379 = vmatprep.subr.mxu0 0.0
    %2380 = vmatpush1.msra.mxu0 0.0
    %2381 = vmatprep.subr.mxu0 0.0
    %2382 = vmatpush1.msra.mxu0 0.0
    %2383 = vmatprep.subr.mxu0 0.0
    %2384 = vmatpush1.msra.mxu0 0.0
    %2385 = vmatprep.subr.mxu0 0.0
    %2386 = vmatpush1.msra.mxu0 0.0
    %2387 = vmatprep.subr.mxu0 0.0
    %2388 = vmatpush1.msra.mxu0 0.0
    %2389 = vmatprep.subr.mxu0 0.0
    %2390 = vmatpush1.msra.mxu0 0.0
    %2391 = vmatprep.subr.mxu0 0.0
    %2392 = vmatpush1.msra.mxu0 0.0
    %2393 = vmatprep.subr.mxu0 0.0
    %2394 = vmatpush1.msra.mxu0 0.0
    %2395 = vmatprep.subr.mxu0 0.0
    %2396 = vmatpush1.msra.mxu0 0.0
    %2397 = vmatprep.subr.mxu0 0.0
    %2398 = vmatpush1.msra.mxu0 0.0
    %2399 = vmatprep.subr.mxu0 0.0
    %2400 = vmatpush1.msra.mxu0 0.0
    %2401 = vmatprep.subr.mxu0 0.0
    %2402 = vmatpush1.msra.mxu0 0.0
    %2403 = vmatprep.subr.mxu0 0.0
    %2404 = vmatpush1.msra.mxu0 0.0
    %2405 = vmatprep.subr.mxu0 0.0
    %2406 = vmatpush1.msra.mxu0 0.0
    %2407 = vmatprep.subr.mxu0 %v2371
    %2408 = vmatpush1.msra.mxu0 %v2369
    %2409 = vmatprep.subr.mxu0 %v2353
    %2410 = vmatpush1.msra.mxu0 %v2352
    %2411 = vmatprep.subr.mxu0 0.0
    %2412 = vmatpush2.msra.mxu0 0.0
    %2413 = vmatprep.subr.mxu0 0.0
    %2414 = vmatpush2.msra.mxu0 0.0
    %2415 = vmatprep.subr.mxu0 0.0
    %2416 = vmatpush2.msra.mxu0 0.0
    %2417 = vmatprep.subr.mxu0 0.0
    %2418 = vmatpush2.msra.mxu0 0.0
    %2419 = vmatprep.subr.mxu0 0.0
    %2420 = vmatpush2.msra.mxu0 0.0
    %2421 = vmatprep.subr.mxu0 0.0
    %2422 = vmatpush2.msra.mxu0 0.0
    %2423 = vmatprep.subr.mxu0 0.0
    %2424 = vmatpush2.msra.mxu0 0.0
    %2425 = vmatprep.subr.mxu0 0.0
    %2426 = vmatpush2.msra.mxu0 0.0
    %2427 = vmatprep.subr.mxu0 0.0
    %2428 = vmatpush2.msra.mxu0 0.0
    %2429 = vmatprep.subr.mxu0 0.0
    %2430 = vmatpush2.msra.mxu0 0.0
    %2431 = vmatprep.subr.mxu0 0.0
    %2432 = vmatpush2.msra.mxu0 0.0
    %2433 = vmatprep.subr.mxu0 0.0
    %2434 = vmatpush2.msra.mxu0 0.0
    %2435 = vmatprep.subr.mxu0 0.0
    %2436 = vmatpush2.msra.mxu0 0.0
    %2437 = vmatprep.subr.mxu0 0.0
    %2438 = vmatpush2.msra.mxu0 0.0
    %2439 = vmatprep.subr.mxu0 0.0
    %2440 = vmatpush2.msra.mxu0 0.0
    %2441 = vmatprep.subr.mxu0 0.0
    %2442 = vmatpush2.msra.mxu0 0.0
    %2443 = vmatprep.mubr.f32.mxu0 0.0
    %2444 = vmatmul.mubr.f32.gmra.mxu0 %v2367
    %v2445 = vpop.f32.mrf.mxu0
    %v2446 = vadd.f32 0.0, %v2445
    %v2447 = vpop.f32.mrf.mxu0
    %v2448 = vadd.f32 0.0, %v2447
    %2449 = vdwg.mxu0
    %2450 = vmatprep.subr.mxu0 0.0
    %2451 = vmatpush1.msra.mxu0 0.0
    %2452 = vmatprep.subr.mxu0 0.0
    %2453 = vmatpush1.msra.mxu0 0.0
    %2454 = vmatprep.subr.mxu0 0.0
    %2455 = vmatpush1.msra.mxu0 0.0
    %2456 = vmatprep.subr.mxu0 0.0
    %2457 = vmatpush1.msra.mxu0 0.0
    %2458 = vmatprep.subr.mxu0 0.0
    %2459 = vmatpush1.msra.mxu0 0.0
    %2460 = vmatprep.subr.mxu0 0.0
    %2461 = vmatpush1.msra.mxu0 0.0
    %2462 = vmatprep.subr.mxu0 0.0
    %2463 = vmatpush1.msra.mxu0 0.0
    %2464 = vmatprep.subr.mxu0 0.0
    %2465 = vmatpush1.msra.mxu0 0.0
    %2466 = vmatprep.subr.mxu0 0.0
    %2467 = vmatpush1.msra.mxu0 0.0
    %2468 = vmatprep.subr.mxu0 0.0
    %2469 = vmatpush1.msra.mxu0 0.0
    %2470 = vmatprep.subr.mxu0 0.0
    %2471 = vmatpush1.msra.mxu0 0.0
    %2472 = vmatprep.subr.mxu0 0.0
    %2473 = vmatpush1.msra.mxu0 0.0
    %2474 = vmatprep.subr.mxu0 0.0
    %2475 = vmatpush1.msra.mxu0 0.0
    %2476 = vmatprep.subr.mxu0 0.0
    %2477 = vmatpush1.msra.mxu0 0.0
    %2478 = vmatprep.subr.mxu0 %v2375
    %2479 = vmatpush1.msra.mxu0 %v2373
    %2480 = vmatprep.subr.mxu0 %v2355
    %2481 = vmatpush1.msra.mxu0 %v2354
    %2482 = vmatprep.subr.mxu0 0.0
    %2483 = vmatpush2.msra.mxu0 0.0
    %2484 = vmatprep.subr.mxu0 0.0
    %2485 = vmatpush2.msra.mxu0 0.0
    %2486 = vmatprep.subr.mxu0 0.0
    %2487 = vmatpush2.msra.mxu0 0.0
    %2488 = vmatprep.subr.mxu0 0.0
    %2489 = vmatpush2.msra.mxu0 0.0
    %2490 = vmatprep.subr.mxu0 0.0
    %2491 = vmatpush2.msra.mxu0 0.0
    %2492 = vmatprep.subr.mxu0 0.0
    %2493 = vmatpush2.msra.mxu0 0.0
    %2494 = vmatprep.subr.mxu0 0.0
    %2495 = vmatpush2.msra.mxu0 0.0
    %2496 = vmatprep.subr.mxu0 0.0
    %2497 = vmatpush2.msra.mxu0 0.0
    %2498 = vmatprep.subr.mxu0 0.0
    %2499 = vmatpush2.msra.mxu0 0.0
    %2500 = vmatprep.subr.mxu0 0.0
    %2501 = vmatpush2.msra.mxu0 0.0
    %2502 = vmatprep.subr.mxu0 0.0
    %2503 = vmatpush2.msra.mxu0 0.0
    %2504 = vmatprep.subr.mxu0 0.0
    %2505 = vmatpush2.msra.mxu0 0.0
    %2506 = vmatprep.subr.mxu0 0.0
    %2507 = vmatpush2.msra.mxu0 0.0
    %2508 = vmatprep.subr.mxu0 0.0
    %2509 = vmatpush2.msra.mxu0 0.0
    %2510 = vmatprep.subr.mxu0 0.0
    %2511 = vmatpush2.msra.mxu0 0.0
    %2512 = vmatprep.subr.mxu0 0.0
    %2513 = vmatpush2.msra.mxu0 0.0
    %2514 = vmatprep.mubr.f32.mxu0 0.0
    %2515 = vmatmul.mubr.f32.gmra.mxu0 %v2367
    %v2516 = vpop.f32.mrf.mxu0
    %v2517 = vpop.f32.mrf.mxu0
    %v2518 = vadd.f32 0.0, %v2517
    %2519 = vdwg.mxu0
    %2520 = vmatprep.subr.mxu0 0.0
    %2521 = vmatpush1.msra.mxu0 0.0
    %2522 = vmatprep.subr.mxu0 0.0
    %2523 = vmatpush1.msra.mxu0 0.0
    %2524 = vmatprep.subr.mxu0 0.0
    %2525 = vmatpush1.msra.mxu0 0.0
    %2526 = vmatprep.subr.mxu0 0.0
    %2527 = vmatpush1.msra.mxu0 0.0
    %2528 = vmatprep.subr.mxu0 0.0
    %2529 = vmatpush1.msra.mxu0 0.0
    %2530 = vmatprep.subr.mxu0 0.0
    %2531 = vmatpush1.msra.mxu0 0.0
    %2532 = vmatprep.subr.mxu0 0.0
    %2533 = vmatpush1.msra.mxu0 0.0
    %2534 = vmatprep.subr.mxu0 0.0
    %2535 = vmatpush1.msra.mxu0 0.0
    %2536 = vmatprep.subr.mxu0 0.0
    %2537 = vmatpush1.msra.mxu0 0.0
    %2538 = vmatprep.subr.mxu0 0.0
    %2539 = vmatpush1.msra.mxu0 0.0
    %2540 = vmatprep.subr.mxu0 0.0
    %2541 = vmatpush1.msra.mxu0 0.0
    %2542 = vmatprep.subr.mxu0 0.0
    %2543 = vmatpush1.msra.mxu0 0.0
    %2544 = vmatprep.subr.mxu0 0.0
    %2545 = vmatpush1.msra.mxu0 0.0
    %2546 = vmatprep.subr.mxu0 0.0
    %2547 = vmatpush1.msra.mxu0 0.0
    %2548 = vmatprep.subr.mxu0 0.0
    %2549 = vmatpush1.msra.mxu0 %v2377
    %2550 = vmatprep.subr.mxu0 0.0
    %2551 = vmatpush1.msra.mxu0 %v2356
    %2552 = vmatprep.subr.mxu0 0.0
    %2553 = vmatpush2.msra.mxu0 0.0
    %2554 = vmatprep.subr.mxu0 0.0
    %2555 = vmatpush2.msra.mxu0 0.0
    %2556 = vmatprep.subr.mxu0 0.0
    %2557 = vmatpush2.msra.mxu0 0.0
    %2558 = vmatprep.subr.mxu0 0.0
    %2559 = vmatpush2.msra.mxu0 0.0
    %2560 = vmatprep.subr.mxu0 0.0
    %2561 = vmatpush2.msra.mxu0 0.0
    %2562 = vmatprep.subr.mxu0 0.0
    %2563 = vmatpush2.msra.mxu0 0.0
    %2564 = vmatprep.subr.mxu0 0.0
    %2565 = vmatpush2.msra.mxu0 0.0
    %2566 = vmatprep.subr.mxu0 0.0
    %2567 = vmatpush2.msra.mxu0 0.0
    %2568 = vmatprep.subr.mxu0 0.0
    %2569 = vmatpush2.msra.mxu0 0.0
    %2570 = vmatprep.subr.mxu0 0.0
    %2571 = vmatpush2.msra.mxu0 0.0
    %2572 = vmatprep.subr.mxu0 0.0
    %2573 = vmatpush2.msra.mxu0 0.0
    %2574 = vmatprep.subr.mxu0 0.0
    %2575 = vmatpush2.msra.mxu0 0.0
    %2576 = vmatprep.subr.mxu0 0.0
    %2577 = vmatpush2.msra.mxu0 0.0
    %2578 = vmatprep.subr.mxu0 0.0
    %2579 = vmatpush2.msra.mxu0 0.0
    %2580 = vmatprep.subr.mxu0 0.0
    %2581 = vmatpush2.msra.mxu0 0.0
    %2582 = vmatprep.subr.mxu0 0.0
    %2583 = vmatpush2.msra.mxu0 0.0
    %2584 = vmatprep.mubr.f32.mxu0 0.0
    %2585 = vmatmul.mubr.f32.gmra.mxu0 %v2367
    %v2586 = vpop.f32.mrf.mxu0
    %v2587 = vadd.f32 0.0, %v2586
    %v2588 = vpop.f32.mrf.mxu0
    %2589 = vdwg.mxu0
    %v2590 = vadd.f32 %v2068, %v2446
    %v2591 = vadd.f32 %v2070, %v2448
    %v2592 = vadd.f32 %v2140, %v2518
    %v2593 = vadd.f32 %v2209, %v2587
    %2595 = vset.pattern.permute.xlu0 0
    %2596 = vperm.xlu0 %2595, %v1453
    %v2597 = vpop.permute.xlu0 %2596
    %v2599 = vadd.f32 %v2590, %v2597
    %v2600 = vadd.f32 %v2591, %v2597
    %v2601 = vadd.f32 %v2592, %v2597
    %v2602 = vadd.f32 %v2593, %v2597
    %v2603 = vmax.f32 %v2599, 0.0
    %v2604 = vmax.f32 %v2600, 0.0
    %v2605 = vmax.f32 %v2601, 0.0
    %v2606 = vmax.f32 %v2602, 0.0
    %2607 = vst [vmem:[#allocation10] sm:$0xff] %v2603
    %2608 = vst [vmem:[#allocation10 + $0x8] sm:$0xff] %v2604
    %2609 = vst [vmem:[#allocation10 + $0x10] sm:$0xff] %v2605
    %2610 = vst [vmem:[#allocation10 + $0x18] sm:$0xff] %v2606
    // Predicated region
    $region46: #{tpu_custom_call.1} parent=1 // pred_check
      _
    $region47: #{tpu_custom_call.1} parent=1 // pred_check_branch
      %2612 = sbr.rel (0) target = $region49
    $region48: #{tpu_custom_call.1} parent=1 // pred_region
      %s2614 = ssub.s32 512, 512
      %2615 = vsyncadd [#allocation6], %s2614
      %s2616 = sshll.u32 [#allocation10], 4
      %s2617 = int_to_ptr.vmem [resolvable:$true] %s2616
      %2622 = dma.vmem_to_hbm [thread:$0]  %s2617, 512, %s8, [#allocation6], 256, 256, 16
    $region49: #{tpu_custom_call.1} parent=1 // pred_fallthru
      _
    // Predicated region
    $region50: #{tpu_custom_call.1} parent=1 // pred_check
      _
    $region51: #{tpu_custom_call.1} parent=1 // pred_check_branch
      %2624 = sbr.rel (0) target = $region53
    $region52: #{tpu_custom_call.1} parent=1 // pred_region
      %2625 = dma.done [#allocation6], 512
    $region53: #{tpu_custom_call.1} parent=1 // pred_fallthru
      _
    %2626 = vsyncpa [#allocation5], 1
    %2627 = vsyncpa [#allocation8], 1
    %2628 = vsyncpa [#allocation6], 1

</llo_original>
